<compile_context>
chip_gen: v7x
topology: tpu7x:2x2x1
jax: 0.10.0
libtpu: 0.0.40
codegen_flags: <defaults>
</compile_context>

<pallas_src>
import jax
import jax.numpy as jnp
from jax.experimental import pallas as pl
from jax.experimental.pallas import tpu as pltpu


def _round_up(n, m):
    return ((n + m - 1) // m) * m


def _pick_batch_tile(B):
    """Sublane-aligned batch tile; keep >=2 grid steps once B is large enough
    so both v7x TensorCores get work under dimension_semantics=('parallel',...)."""
    if B >= 16:
        cap = min(128, B // 2)
        for tb in (128, 64, 32, 16, 8):
            if tb <= cap and B % tb == 0:
                return tb
    for tb in (8, 4, 2):
        if B % tb == 0:
            return tb
    return B  # TODO(synk): odd batches fall back to one (possibly unaligned) tile


def _pick_hw_tile(HW, TB, C, D8, budget_bytes=6 << 20):
    """Largest spatial chunk (multiple of 128, or full HW) whose live footprint
    (h chunk + double-buffered x chunk) stays under ~6 MiB — safe on every
    generation including v7x's 64 MiB physical VMEM."""
    per_spatial = TB * D8 * 4 + 2 * TB * _round_up(C, 8) * 4
    cands = [d for d in range(HW, 0, -1)
             if HW % d == 0 and (d % 128 == 0 or d == HW)]
    for d in cands:
        if d * per_spatial <= budget_bytes:
            return d
    return cands[-1]


def _vmem_limit_bytes(TB, C, THW, D8, KP, DH, mxu_bytes, single_buffer_weights):
    """Explicit scoped-VMEM request derived from the actual tiles (+headroom)."""
    def pad2(r, c, b=4):
        return _round_up(max(r, 1), 8) * _round_up(max(c, 1), 128) * b

    x_tile = TB * _round_up(C, 8) * _round_up(THW, 128) * 4 * 2   # double-buffered input
    wbuf = 1 if single_buffer_weights else 2
    weights = (pad2(D8, C) + pad2(D8, 1) + pad2(D8, KP + DH, mxu_bytes)
               + pad2(1, KP + DH) + pad2(DH, DH, mxu_bytes) + pad2(1, DH)) * wbuf
    outs = (pad2(TB, KP) + pad2(TB, DH) + pad2(TB, D8)) * 2       # double-buffered outputs
    scratch = pad2(TB, D8)
    h_live = TB * _round_up(D8, 8) * _round_up(THW, 128) * 4      # stem intermediate
    est = x_tile + weights + outs + scratch + h_live
    # generous headroom; never below the 32 MiB default so small shapes can't regress
    return int(min(100 << 20, max(32 << 20, 2 * est + (8 << 20))))


def prepare_weights(params, mxu_dtype=jnp.bfloat16):
    """Pad / fuse weights ONCE (hoisted out of the per-forward path).

    * stem weights padded only to D8 = round_up(D, 8) (sublane alignment).
    * classifier and proj_head layer-1 fused into one head weight with
      separate 128-lane banks; built with pad+concat (no scatters).
    * MXU operand weights stored in `mxu_dtype` (bf16 on v6e/v7x for 2x MXU
      throughput / half the weight DMA); biases stay f32 (added post-MXU).
    """
    f32 = jnp.float32
    D, C = params["wc"].shape
    K = params["wfc"].shape[0]
    D8 = _round_up(D, 8)       # stem / pool / feat width (NOT 128-padded)
    KP = _round_up(K, 128)     # lane-dense classifier bank
    DH = _round_up(D, 128)     # lane-dense proj bank

    wc = jnp.pad(params["wc"].astype(f32), ((0, D8 - D), (0, 0)))            # [D8, C]
    bc = jnp.pad(params["bc"].astype(f32), (0, D8 - D)).reshape(D8, 1)       # [D8, 1]

    wh = jnp.concatenate(
        [jnp.pad(params["wfc"].T.astype(f32), ((0, D8 - D), (0, KP - K))),
         jnp.pad(params["w1"].T.astype(f32), ((0, D8 - D), (0, DH - D)))],
        axis=1).astype(mxu_dtype)                                            # [D8, KP+DH]
    bh = jnp.concatenate(
        [jnp.pad(params["bfc"].astype(f32), (0, KP - K)),
         jnp.pad(params["b1"].astype(f32), (0, DH - D))]).reshape(1, KP + DH)

    w2 = jnp.pad(params["w2"].T.astype(f32),
                 ((0, DH - D), (0, DH - D))).astype(mxu_dtype)               # [DH, DH]
    b2 = jnp.pad(params["b2"].astype(f32), (0, DH - D)).reshape(1, DH)

    return dict(C=C, D=D, K=K, D8=D8, KP=KP, DH=DH,
                wc=wc, bc=bc, wh=wh, bh=bh, w2=w2, b2=b2)


def _make_kernel(C, KP, HW):
    inv_hw = 1.0 / float(HW)

    def kernel(x_ref, wc_ref, bc_ref, wh_ref, bh_ref, w2_ref, b2_ref,
               out_ref, proj_ref, feat_ref, fsum_ref):
        j = pl.program_id(1)                      # spatial-chunk (reduction) axis

        x = x_ref[...]                            # [TB, C, THW]  (f32)
        wc = wc_ref[...]                          # [D8, C]

        # ---- backbone stem: 1x1 conv (C -> D8) + bias + ReLU ---------------
        if C <= 8:
            # tiny C: C broadcast multiply-adds on the VPU (kept f32 — v5e has
            # no bf16 VALU) instead of a depth-C MXU contraction.
            h = bc_ref[...][None]                 # [1, D8, 1]
            for c in range(C):
                h = h + wc[:, c:c + 1][None] * x[:, c:c + 1, :]
        else:
            h = jnp.einsum("dc,bcp->bdp", wc, x,
                           preferred_element_type=jnp.float32)
            h = h + bc_ref[...][None]
        h = jnp.maximum(h, 0.0)                   # [TB, D8, THW]

        # ---- global average pool, accumulated across spatial chunks --------
        csum = jnp.sum(h, axis=-1)                # [TB, D8] (lane-axis reduce)

        @pl.when(j == 0)
        def _():
            fsum_ref[...] = jnp.zeros_like(fsum_ref)

        fsum_ref[...] += csum

        # ---- finalize on the last spatial chunk -----------------------------
        @pl.when(j == pl.num_programs(1) - 1)
        def _():
            feat = fsum_ref[...] * inv_hw                          # [TB, D8] f32
            feat_ref[...] = feat.astype(feat_ref.dtype)

            # fused classifier + proj_head layer-1: one MXU pass, contraction
            # depth D8 (the MXU pads short depth for free), 128-lane banks.
            head = jnp.dot(feat.astype(wh_ref.dtype), wh_ref[...],
                           preferred_element_type=jnp.float32) + bh_ref[...]
            out_ref[...] = head[:, :KP].astype(out_ref.dtype)

            z = jnp.maximum(head[:, KP:], 0.0)                     # [TB, DH]
            proj = jnp.dot(z.astype(w2_ref.dtype), w2_ref[...],
                           preferred_element_type=jnp.float32) + b2_ref[...]
            proj_ref[...] = proj.astype(proj_ref.dtype)

    return kernel


def _build_call(prep, x_shape, TB, THW, single_buffer_weights):
    B, C, HW = x_shape
    D8, KP, DH = prep["D8"], prep["KP"], prep["DH"]
    nb, nhw = B // TB, HW // THW
    f32 = jnp.float32

    def wspec(shape):
        nd = len(shape)
        idx = lambda i, j, _n=nd: (0,) * _n
        if single_buffer_weights:
            # constant index_map -> fetched once; single buffer halves the
            # resident weight footprint (matters for realistic D on v7x).
            return pl.BlockSpec(shape, idx, pipeline_mode=pl.Buffered(1))
        return pl.BlockSpec(shape, idx)

    mxu_bytes = jnp.dtype(prep["wh"].dtype).itemsize
    vmem_limit = _vmem_limit_bytes(TB, C, THW, D8, KP, DH, mxu_bytes,
                                   single_buffer_weights)

    return pl.pallas_call(
        _make_kernel(C, KP, HW),
        out_shape=(jax.ShapeDtypeStruct((B, KP), f32),
                   jax.ShapeDtypeStruct((B, DH), f32),
                   jax.ShapeDtypeStruct((B, D8), f32)),
        grid_spec=pltpu.PrefetchScalarGridSpec(
            num_scalar_prefetch=0,
            grid=(nb, nhw),
            in_specs=[pl.BlockSpec((TB, C, THW), lambda i, j: (i, 0, j)),
                      wspec((D8, C)),
                      wspec((D8, 1)),
                      wspec((D8, KP + DH)),
                      wspec((1, KP + DH)),
                      wspec((DH, DH)),
                      wspec((1, DH))],
            out_specs=[pl.BlockSpec((TB, KP), lambda i, j: (i, 0)),
                       pl.BlockSpec((TB, DH), lambda i, j: (i, 0)),
                       pl.BlockSpec((TB, D8), lambda i, j: (i, 0))],
            scratch_shapes=[pltpu.VMEM((TB, D8), jnp.float32)]),
        compiler_params=pltpu.CompilerParams(
            dimension_semantics=("parallel", "arbitrary"),
            vmem_limit_bytes=vmem_limit),
    )


# Resolved lazily: does this jax version accept pl.Buffered(1) weight specs?
_WEIGHT_BUF1_OK = None


def _run(x_flat, prep, TB, THW):
    global _WEIGHT_BUF1_OK
    args = (x_flat, prep["wc"], prep["bc"], prep["wh"], prep["bh"],
            prep["w2"], prep["b2"])
    if _WEIGHT_BUF1_OK is None:
        try:
            res = _build_call(prep, x_flat.shape, TB, THW, True)(*args)
            jax.block_until_ready(res)
            _WEIGHT_BUF1_OK = True
            return res
        except Exception:
            _WEIGHT_BUF1_OK = False
    return _build_call(prep, x_flat.shape, TB, THW, _WEIGHT_BUF1_OK)(*args)


def wrapper_forward(x_nchw, prep, bb_grad=True):
    B, C, H, W = x_nchw.shape
    assert C == prep["C"]
    HW = H * W
    D, K = prep["D"], prep["K"]

    # NCHW -> [B, C, HW]: pure reshape, no transpose / extra HBM pass.
    x_flat = x_nchw.reshape(B, C, HW)

    TB = _pick_batch_tile(B)
    THW = _pick_hw_tile(HW, TB, C, prep["D8"])

    out_p, proj_p, feat_p = _run(x_flat, prep, TB, THW)

    out = out_p[:, :K]
    proj = proj_p[:, :D]
    feat = feat_p[:, :D]
    if not bb_grad:
        # TODO(synk): forward-only — PyTorch detaches feat *before* proj_head;
        # gradient flow would differ (no custom_vjp is defined here).
        feat = jax.lax.stop_gradient(feat)
    return out, proj, feat


def reference_forward(x_nchw, params):
    """Pure-JAX reference matching the PyTorch semantics."""
    B, C, H, W = x_nchw.shape
    xf = jnp.transpose(x_nchw, (0, 2, 3, 1)).reshape(B, H * W, C)
    h = jnp.maximum(jnp.einsum("bpc,dc->bpd", xf, params["wc"])
                    + params["bc"], 0.0)
    feat = h.mean(axis=1)
    out = feat @ params["wfc"].T + params["bfc"]
    z = jnp.maximum(feat @ params["w1"].T + params["b1"], 0.0)
    proj = z @ params["w2"].T + params["b2"]
    return out, proj, feat


def init_params(key, C, D, K):
    ks = jax.random.split(key, 8)
    s = 0.1
    return {
        # backbone stem: 1x1 conv C -> D  (stored PyTorch-style [out, in])
        "wc":  s * jax.random.normal(ks[0], (D, C), jnp.float32),
        "bc":  s * jax.random.normal(ks[1], (D,), jnp.float32),
        # backbone classifier: Linear(D, K)
        "wfc": s * jax.random.normal(ks[2], (K, D), jnp.float32),
        "bfc": s * jax.random.normal(ks[3], (K,), jnp.float32),
        # proj_head: Linear(D, D) -> ReLU -> Linear(D, D)
        "w1":  s * jax.random.normal(ks[4], (D, D), jnp.float32),
        "b1":  s * jax.random.normal(ks[5], (D,), jnp.float32),
        "w2":  s * jax.random.normal(ks[6], (D, D), jnp.float32),
        "b2":  s * jax.random.normal(ks[7], (D,), jnp.float32),
    }


if __name__ == "__main__":
    B, C, H, W = 2, 4, 16, 16
    D, K = 32, 10   # feat_dim, num classes

    key = jax.random.PRNGKey(0)
    kx, kp = jax.random.split(key)
    x = jax.random.normal(kx, (B, C, H, W), jnp.float32)
    params = init_params(kp, C, D, K)

    r_out, r_proj, r_feat = reference_forward(x, params)

    # exact path: f32 MXU operands
    prep_f32 = prepare_weights(params, mxu_dtype=jnp.float32)
    out, proj, feat = wrapper_forward(x, prep_f32, bb_grad=True)
    jax.block_until_ready((out, proj, feat))
    assert out.shape == (B, K) and proj.shape == (B, D) and feat.shape == (B, D)
    assert jnp.allclose(out, r_out, atol=1e-4, rtol=1e-4)
    assert jnp.allclose(proj, r_proj, atol=1e-4, rtol=1e-4)
    assert jnp.allclose(feat, r_feat, atol=1e-4, rtol=1e-4)

    # fast path: bf16 MXU operands (2x MXU throughput / half weight DMA on v6e/v7x)
    prep_bf16 = prepare_weights(params, mxu_dtype=jnp.bfloat16)
    out_b, proj_b, feat_b = wrapper_forward(x, prep_bf16, bb_grad=False)
    jax.block_until_ready((out_b, proj_b, feat_b))
    assert jnp.allclose(out_b, r_out, atol=3e-2, rtol=3e-2)
    assert jnp.allclose(proj_b, r_proj, atol=3e-2, rtol=3e-2)
    assert jnp.allclose(feat_b, r_feat, atol=3e-2, rtol=3e-2)

    print("KERNEL_OK")
</pallas_src>

<mosaic_0001>
module attributes {stable_mosaic.version = 11 : i64} {
  func.func @kernel(%arg0: i32, %arg1: i32, %arg2: memref<2x4x256xf32, #tpu.memory_space<vmem>>, %arg3: memref<32x4xf32, #tpu.memory_space<vmem>>, %arg4: memref<32x1xf32, #tpu.memory_space<vmem>>, %arg5: memref<32x256xf32, #tpu.memory_space<vmem>>, %arg6: memref<1x256xf32, #tpu.memory_space<vmem>>, %arg7: memref<128x128xf32, #tpu.memory_space<vmem>>, %arg8: memref<1x128xf32, #tpu.memory_space<vmem>>, %arg9: memref<2x128xf32, #tpu.memory_space<vmem>>, %arg10: memref<2x128xf32, #tpu.memory_space<vmem>>, %arg11: memref<2x32xf32, #tpu.memory_space<vmem>>, %arg12: memref<2x32xf32, #tpu.memory_space<vmem>>) attributes {dimension_semantics = [#tpu.dimension_semantics<parallel>, #tpu.dimension_semantics<arbitrary>], iteration_bounds = array<i64: 1, 1>, scalar_prefetch = 0 : i64, scratch_operands = 1 : i64, tpu.core_type = #tpu.core_type<tc>, window_params = [{transform_indices = @transform_0, window_bounds = array<i64: 2, 4, 256>}, {pipeline_mode = #tpu.pipeline_mode<synchronous>, transform_indices = @transform_1, window_bounds = array<i64: 32, 4>}, {pipeline_mode = #tpu.pipeline_mode<synchronous>, transform_indices = @transform_2, window_bounds = array<i64: 32, 1>}, {pipeline_mode = #tpu.pipeline_mode<synchronous>, transform_indices = @transform_3, window_bounds = array<i64: 32, 256>}, {pipeline_mode = #tpu.pipeline_mode<synchronous>, transform_indices = @transform_4, window_bounds = array<i64: 1, 256>}, {pipeline_mode = #tpu.pipeline_mode<synchronous>, transform_indices = @transform_5, window_bounds = array<i64: 128, 128>}, {pipeline_mode = #tpu.pipeline_mode<synchronous>, transform_indices = @transform_6, window_bounds = array<i64: 1, 128>}, {transform_indices = @transform_7, window_bounds = array<i64: 2, 128>}, {transform_indices = @transform_8, window_bounds = array<i64: 2, 128>}, {transform_indices = @transform_9, window_bounds = array<i64: 2, 32>}]} {
    %c0 = arith.constant 0 : index
    %c0_0 = arith.constant 0 : index
    %c0_1 = arith.constant 0 : index
    %0 = vector.load %arg2[%c0, %c0_0, %c0_1] : memref<2x4x256xf32, #tpu.memory_space<vmem>>, vector<2x4x256xf32>
    %c0_2 = arith.constant 0 : index
    %c0_3 = arith.constant 0 : index
    %1 = vector.load %arg3[%c0_2, %c0_3] : memref<32x4xf32, #tpu.memory_space<vmem>>, vector<32x4xf32>
    %c0_4 = arith.constant 0 : index
    %c0_5 = arith.constant 0 : index
    %2 = vector.load %arg4[%c0_4, %c0_5] : memref<32x1xf32, #tpu.memory_space<vmem>>, vector<32x1xf32>
    %3 = vector.shape_cast %2 : vector<32x1xf32> to vector<1x32x1xf32>
    %4 = vector.extract_strided_slice %1 {offsets = [0, 0], sizes = [32, 1], strides = [1, 1]} : vector<32x4xf32> to vector<32x1xf32>
    %5 = vector.shape_cast %4 : vector<32x1xf32> to vector<1x32x1xf32>
    %6 = vector.extract_strided_slice %0 {offsets = [0, 0, 0], sizes = [2, 1, 256], strides = [1, 1, 1]} : vector<2x4x256xf32> to vector<2x1x256xf32>
    %7 = vector.broadcast %5 : vector<1x32x1xf32> to vector<2x32x256xf32>
    %8 = vector.broadcast %6 : vector<2x1x256xf32> to vector<2x32x256xf32>
    %9 = arith.mulf %7, %8 : vector<2x32x256xf32>
    %10 = vector.broadcast %3 : vector<1x32x1xf32> to vector<2x32x256xf32>
    %11 = arith.addf %10, %9 : vector<2x32x256xf32>
    %12 = vector.extract_strided_slice %1 {offsets = [0, 1], sizes = [32, 1], strides = [1, 1]} : vector<32x4xf32> to vector<32x1xf32>
    %13 = vector.shape_cast %12 : vector<32x1xf32> to vector<1x32x1xf32>
    %14 = vector.extract_strided_slice %0 {offsets = [0, 1, 0], sizes = [2, 1, 256], strides = [1, 1, 1]} : vector<2x4x256xf32> to vector<2x1x256xf32>
    %15 = vector.broadcast %13 : vector<1x32x1xf32> to vector<2x32x256xf32>
    %16 = vector.broadcast %14 : vector<2x1x256xf32> to vector<2x32x256xf32>
    %17 = arith.mulf %15, %16 : vector<2x32x256xf32>
    %18 = arith.addf %11, %17 : vector<2x32x256xf32>
    %19 = vector.extract_strided_slice %1 {offsets = [0, 2], sizes = [32, 1], strides = [1, 1]} : vector<32x4xf32> to vector<32x1xf32>
    %20 = vector.shape_cast %19 : vector<32x1xf32> to vector<1x32x1xf32>
    %21 = vector.extract_strided_slice %0 {offsets = [0, 2, 0], sizes = [2, 1, 256], strides = [1, 1, 1]} : vector<2x4x256xf32> to vector<2x1x256xf32>
    %22 = vector.broadcast %20 : vector<1x32x1xf32> to vector<2x32x256xf32>
    %23 = vector.broadcast %21 : vector<2x1x256xf32> to vector<2x32x256xf32>
    %24 = arith.mulf %22, %23 : vector<2x32x256xf32>
    %25 = arith.addf %18, %24 : vector<2x32x256xf32>
    %26 = vector.extract_strided_slice %1 {offsets = [0, 3], sizes = [32, 1], strides = [1, 1]} : vector<32x4xf32> to vector<32x1xf32>
    %27 = vector.shape_cast %26 : vector<32x1xf32> to vector<1x32x1xf32>
    %28 = vector.extract_strided_slice %0 {offsets = [0, 3, 0], sizes = [2, 1, 256], strides = [1, 1, 1]} : vector<2x4x256xf32> to vector<2x1x256xf32>
    %29 = vector.broadcast %27 : vector<1x32x1xf32> to vector<2x32x256xf32>
    %30 = vector.broadcast %28 : vector<2x1x256xf32> to vector<2x32x256xf32>
    %31 = arith.mulf %29, %30 : vector<2x32x256xf32>
    %32 = arith.addf %25, %31 : vector<2x32x256xf32>
    %cst = arith.constant 0.000000e+00 : f32
    %33 = vector.broadcast %cst : f32 to vector<2x32x256xf32>
    %34 = arith.maximumf %32, %33 : vector<2x32x256xf32>
    %cst_6 = arith.constant dense<0.000000e+00> : vector<2x32xf32>
    %35 = vector.multi_reduction <add>, %34, %cst_6 [2] : vector<2x32x256xf32> to vector<2x32xf32>
    %c0_i32 = arith.constant 0 : i32
    %36 = arith.cmpi eq, %arg1, %c0_i32 : i32
    %37 = arith.extui %36 : i1 to i32
    %c0_i32_7 = arith.constant 0 : i32
    %38 = arith.cmpi ne, %37, %c0_i32_7 : i32
    scf.if %38 {
      %cst_14 = arith.constant 0.000000e+00 : f32
      %45 = vector.broadcast %cst_14 : f32 to vector<2x32xf32>
      %c0_15 = arith.constant 0 : index
      %c0_16 = arith.constant 0 : index
      %46 = vector.load %arg12[%c0_15, %c0_16] : memref<2x32xf32, #tpu.memory_space<vmem>>, vector<2x32xf32>
      tpu.vector_store %arg12[%c0_15, %c0_16], %45 {strides = array<i32>} : memref<2x32xf32, #tpu.memory_space<vmem>>, vector<2x32xf32>,
    } else {
    }
    %c0_8 = arith.constant 0 : index
    %c0_9 = arith.constant 0 : index
    %39 = vector.load %arg12[%c0_8, %c0_9] : memref<2x32xf32, #tpu.memory_space<vmem>>, vector<2x32xf32>
    %40 = arith.addf %39, %35 : vector<2x32xf32>
    %c0_10 = arith.constant 0 : index
    %c0_11 = arith.constant 0 : index
    %41 = vector.load %arg12[%c0_10, %c0_11] : memref<2x32xf32, #tpu.memory_space<vmem>>, vector<2x32xf32>
    tpu.vector_store %arg12[%c0_10, %c0_11], %40 {strides = array<i32>} : memref<2x32xf32, #tpu.memory_space<vmem>>, vector<2x32xf32>,
    %c0_i32_12 = arith.constant 0 : i32
    %42 = arith.cmpi eq, %arg1, %c0_i32_12 : i32
    %43 = arith.extui %42 : i1 to i32
    %c0_i32_13 = arith.constant 0 : i32
    %44 = arith.cmpi ne, %43, %c0_i32_13 : i32
    scf.if %44 {
      %c0_14 = arith.constant 0 : index
      %c0_15 = arith.constant 0 : index
      %45 = vector.load %arg12[%c0_14, %c0_15] : memref<2x32xf32, #tpu.memory_space<vmem>>, vector<2x32xf32>
      %cst_16 = arith.constant 3.906250e-03 : f32
      %46 = vector.broadcast %cst_16 : f32 to vector<2x32xf32>
      %47 = arith.mulf %45, %46 : vector<2x32xf32>
      %c0_17 = arith.constant 0 : index
      %c0_18 = arith.constant 0 : index
      %48 = vector.load %arg11[%c0_17, %c0_18] : memref<2x32xf32, #tpu.memory_space<vmem>>, vector<2x32xf32>
      tpu.vector_store %arg11[%c0_17, %c0_18], %47 {strides = array<i32>} : memref<2x32xf32, #tpu.memory_space<vmem>>, vector<2x32xf32>,
      %c0_19 = arith.constant 0 : index
      %c0_20 = arith.constant 0 : index
      %49 = vector.load %arg5[%c0_19, %c0_20] : memref<32x256xf32, #tpu.memory_space<vmem>>, vector<32x256xf32>
      %cst_21 = arith.constant dense<0.000000e+00> : vector<2x256xf32>
      %50 = tpu.matmul %47, %49, %cst_21 {dimension_numbers = #tpu.dot_dimension_numbers<[1], [0], [0], [1], [0, 0, 1, 1], [], []>} : vector<2x32xf32>, vector<32x256xf32>, vector<2x256xf32> -> vector<2x256xf32>
      %c0_22 = arith.constant 0 : index
      %c0_23 = arith.constant 0 : index
      %51 = vector.load %arg6[%c0_22, %c0_23] : memref<1x256xf32, #tpu.memory_space<vmem>>, vector<1x256xf32>
      %52 = vector.broadcast %51 : vector<1x256xf32> to vector<2x256xf32>
      %53 = arith.addf %50, %52 : vector<2x256xf32>
      %54 = vector.extract_strided_slice %53 {offsets = [0, 0], sizes = [2, 128], strides = [1, 1]} : vector<2x256xf32> to vector<2x128xf32>
      %c0_24 = arith.constant 0 : index
      %c0_25 = arith.constant 0 : index
      %55 = vector.load %arg9[%c0_24, %c0_25] : memref<2x128xf32, #tpu.memory_space<vmem>>, vector<2x128xf32>
      tpu.vector_store %arg9[%c0_24, %c0_25], %54 {strides = array<i32>} : memref<2x128xf32, #tpu.memory_space<vmem>>, vector<2x128xf32>,
      %56 = vector.extract_strided_slice %53 {offsets = [0, 128], sizes = [2, 128], strides = [1, 1]} : vector<2x256xf32> to vector<2x128xf32>
      %cst_26 = arith.constant 0.000000e+00 : f32
      %57 = vector.broadcast %cst_26 : f32 to vector<2x128xf32>
      %58 = arith.maximumf %56, %57 : vector<2x128xf32>
      %c0_27 = arith.constant 0 : index
      %c0_28 = arith.constant 0 : index
      %59 = vector.load %arg7[%c0_27, %c0_28] : memref<128x128xf32, #tpu.memory_space<vmem>>, vector<128x128xf32>
      %cst_29 = arith.constant dense<0.000000e+00> : vector<2x128xf32>
      %60 = tpu.matmul %58, %59, %cst_29 {dimension_numbers = #tpu.dot_dimension_numbers<[1], [0], [0], [1], [0, 0, 1, 1], [], []>} : vector<2x128xf32>, vector<128x128xf32>, vector<2x128xf32> -> vector<2x128xf32>
      %c0_30 = arith.constant 0 : index
      %c0_31 = arith.constant 0 : index
      %61 = vector.load %arg8[%c0_30, %c0_31] : memref<1x128xf32, #tpu.memory_space<vmem>>, vector<1x128xf32>
      %62 = vector.broadcast %61 : vector<1x128xf32> to vector<2x128xf32>
      %63 = arith.addf %60, %62 : vector<2x128xf32>
      %c0_32 = arith.constant 0 : index
      %c0_33 = arith.constant 0 : index
      %64 = vector.load %arg10[%c0_32, %c0_33] : memref<2x128xf32, #tpu.memory_space<vmem>>, vector<2x128xf32>
      tpu.vector_store %arg10[%c0_32, %c0_33], %63 {strides = array<i32>} : memref<2x128xf32, #tpu.memory_space<vmem>>, vector<2x128xf32>,
    } else {
    }
    return
  }
  func.func @transform_0(%arg0: i32, %arg1: i32) -> (i32, i32, i32) {
    %c0_i32 = arith.constant 0 : i32
    %c0_i32_0 = arith.constant 0 : i32
    return %arg0, %c0_i32, %arg1 : i32, i32, i32
  }
  func.func @transform_1(%arg0: i32, %arg1: i32) -> (i32, i32) {
    %c0_i32 = arith.constant 0 : i32
    %c0_i32_0 = arith.constant 0 : i32
    %c0_i32_1 = arith.constant 0 : i32
    return %c0_i32, %c0_i32_0 : i32, i32
  }
  func.func @transform_2(%arg0: i32, %arg1: i32) -> (i32, i32) {
    %c0_i32 = arith.constant 0 : i32
    %c0_i32_0 = arith.constant 0 : i32
    %c0_i32_1 = arith.constant 0 : i32
    return %c0_i32, %c0_i32_0 : i32, i32
  }
  func.func @transform_3(%arg0: i32, %arg1: i32) -> (i32, i32) {
    %c0_i32 = arith.constant 0 : i32
    %c0_i32_0 = arith.constant 0 : i32
    %c0_i32_1 = arith.constant 0 : i32
    return %c0_i32, %c0_i32_0 : i32, i32
  }
  func.func @transform_4(%arg0: i32, %arg1: i32) -> (i32, i32) {
    %c0_i32 = arith.constant 0 : i32
    %c0_i32_0 = arith.constant 0 : i32
    %c0_i32_1 = arith.constant 0 : i32
    return %c0_i32, %c0_i32_0 : i32, i32
  }
  func.func @transform_5(%arg0: i32, %arg1: i32) -> (i32, i32) {
    %c0_i32 = arith.constant 0 : i32
    %c0_i32_0 = arith.constant 0 : i32
    %c0_i32_1 = arith.constant 0 : i32
    return %c0_i32, %c0_i32_0 : i32, i32
  }
  func.func @transform_6(%arg0: i32, %arg1: i32) -> (i32, i32) {
    %c0_i32 = arith.constant 0 : i32
    %c0_i32_0 = arith.constant 0 : i32
    %c0_i32_1 = arith.constant 0 : i32
    return %c0_i32, %c0_i32_0 : i32, i32
  }
  func.func @transform_7(%arg0: i32, %arg1: i32) -> (i32, i32) {
    %c0_i32 = arith.constant 0 : i32
    %c0_i32_0 = arith.constant 0 : i32
    return %arg0, %c0_i32 : i32, i32
  }
  func.func @transform_8(%arg0: i32, %arg1: i32) -> (i32, i32) {
    %c0_i32 = arith.constant 0 : i32
    %c0_i32_0 = arith.constant 0 : i32
    return %arg0, %c0_i32 : i32, i32
  }
  func.func @transform_9(%arg0: i32, %arg1: i32) -> (i32, i32) {
    %c0_i32 = arith.constant 0 : i32
    %c0_i32_0 = arith.constant 0 : i32
    return %arg0, %c0_i32 : i32, i32
  }
}

module attributes {stable_mosaic.version = 11 : i64} {
  func.func @kernel(%arg0: i32, %arg1: i32, %arg2: memref<2x4x256xf32, #tpu.memory_space<vmem>>, %arg3: memref<32x4xf32, #tpu.memory_space<vmem>>, %arg4: memref<32x1xf32, #tpu.memory_space<vmem>>, %arg5: memref<32x256xf32, #tpu.memory_space<vmem>>, %arg6: memref<1x256xf32, #tpu.memory_space<vmem>>, %arg7: memref<128x128xf32, #tpu.memory_space<vmem>>, %arg8: memref<1x128xf32, #tpu.memory_space<vmem>>, %arg9: memref<2x128xf32, #tpu.memory_space<vmem>>, %arg10: memref<2x128xf32, #tpu.memory_space<vmem>>, %arg11: memref<2x32xf32, #tpu.memory_space<vmem>>, %arg12: memref<2x32xf32, #tpu.memory_space<vmem>>) attributes {dimension_semantics = [#tpu.dimension_semantics<parallel>, #tpu.dimension_semantics<arbitrary>], iteration_bounds = array<i64: 1, 1>, scalar_prefetch = 0 : i64, scratch_operands = 1 : i64, tpu.core_type = #tpu.core_type<tc>, window_params = [{transform_indices = @transform_0, window_bounds = array<i64: 2, 4, 256>}, {pipeline_mode = #tpu.pipeline_mode<synchronous>, transform_indices = @transform_1, window_bounds = array<i64: 32, 4>}, {pipeline_mode = #tpu.pipeline_mode<synchronous>, transform_indices = @transform_2, window_bounds = array<i64: 32, 1>}, {pipeline_mode = #tpu.pipeline_mode<synchronous>, transform_indices = @transform_3, window_bounds = array<i64: 32, 256>}, {pipeline_mode = #tpu.pipeline_mode<synchronous>, transform_indices = @transform_4, window_bounds = array<i64: 1, 256>}, {pipeline_mode = #tpu.pipeline_mode<synchronous>, transform_indices = @transform_5, window_bounds = array<i64: 128, 128>}, {pipeline_mode = #tpu.pipeline_mode<synchronous>, transform_indices = @transform_6, window_bounds = array<i64: 1, 128>}, {transform_indices = @transform_7, window_bounds = array<i64: 2, 128>}, {transform_indices = @transform_8, window_bounds = array<i64: 2, 128>}, {transform_indices = @transform_9, window_bounds = array<i64: 2, 32>}]} {
    %c0 = arith.constant 0 : index
    %c0_0 = arith.constant 0 : index
    %c0_1 = arith.constant 0 : index
    %0 = vector.load %arg2[%c0, %c0_0, %c0_1] : memref<2x4x256xf32, #tpu.memory_space<vmem>>, vector<2x4x256xf32>
    %c0_2 = arith.constant 0 : index
    %c0_3 = arith.constant 0 : index
    %1 = vector.load %arg3[%c0_2, %c0_3] : memref<32x4xf32, #tpu.memory_space<vmem>>, vector<32x4xf32>
    %c0_4 = arith.constant 0 : index
    %c0_5 = arith.constant 0 : index
    %2 = vector.load %arg4[%c0_4, %c0_5] : memref<32x1xf32, #tpu.memory_space<vmem>>, vector<32x1xf32>
    %3 = vector.shape_cast %2 : vector<32x1xf32> to vector<1x32x1xf32>
    %4 = vector.extract_strided_slice %1 {offsets = [0, 0], sizes = [32, 1], strides = [1, 1]} : vector<32x4xf32> to vector<32x1xf32>
    %5 = vector.shape_cast %4 : vector<32x1xf32> to vector<1x32x1xf32>
    %6 = vector.extract_strided_slice %0 {offsets = [0, 0, 0], sizes = [2, 1, 256], strides = [1, 1, 1]} : vector<2x4x256xf32> to vector<2x1x256xf32>
    %7 = vector.broadcast %5 : vector<1x32x1xf32> to vector<2x32x256xf32>
    %8 = vector.broadcast %6 : vector<2x1x256xf32> to vector<2x32x256xf32>
    %9 = arith.mulf %7, %8 : vector<2x32x256xf32>
    %10 = vector.broadcast %3 : vector<1x32x1xf32> to vector<2x32x256xf32>
    %11 = arith.addf %10, %9 : vector<2x32x256xf32>
    %12 = vector.extract_strided_slice %1 {offsets = [0, 1], sizes = [32, 1], strides = [1, 1]} : vector<32x4xf32> to vector<32x1xf32>
    %13 = vector.shape_cast %12 : vector<32x1xf32> to vector<1x32x1xf32>
    %14 = vector.extract_strided_slice %0 {offsets = [0, 1, 0], sizes = [2, 1, 256], strides = [1, 1, 1]} : vector<2x4x256xf32> to vector<2x1x256xf32>
    %15 = vector.broadcast %13 : vector<1x32x1xf32> to vector<2x32x256xf32>
    %16 = vector.broadcast %14 : vector<2x1x256xf32> to vector<2x32x256xf32>
    %17 = arith.mulf %15, %16 : vector<2x32x256xf32>
    %18 = arith.addf %11, %17 : vector<2x32x256xf32>
    %19 = vector.extract_strided_slice %1 {offsets = [0, 2], sizes = [32, 1], strides = [1, 1]} : vector<32x4xf32> to vector<32x1xf32>
    %20 = vector.shape_cast %19 : vector<32x1xf32> to vector<1x32x1xf32>
    %21 = vector.extract_strided_slice %0 {offsets = [0, 2, 0], sizes = [2, 1, 256], strides = [1, 1, 1]} : vector<2x4x256xf32> to vector<2x1x256xf32>
    %22 = vector.broadcast %20 : vector<1x32x1xf32> to vector<2x32x256xf32>
    %23 = vector.broadcast %21 : vector<2x1x256xf32> to vector<2x32x256xf32>
    %24 = arith.mulf %22, %23 : vector<2x32x256xf32>
    %25 = arith.addf %18, %24 : vector<2x32x256xf32>
    %26 = vector.extract_strided_slice %1 {offsets = [0, 3], sizes = [32, 1], strides = [1, 1]} : vector<32x4xf32> to vector<32x1xf32>
    %27 = vector.shape_cast %26 : vector<32x1xf32> to vector<1x32x1xf32>
    %28 = vector.extract_strided_slice %0 {offsets = [0, 3, 0], sizes = [2, 1, 256], strides = [1, 1, 1]} : vector<2x4x256xf32> to vector<2x1x256xf32>
    %29 = vector.broadcast %27 : vector<1x32x1xf32> to vector<2x32x256xf32>
    %30 = vector.broadcast %28 : vector<2x1x256xf32> to vector<2x32x256xf32>
    %31 = arith.mulf %29, %30 : vector<2x32x256xf32>
    %32 = arith.addf %25, %31 : vector<2x32x256xf32>
    %cst = arith.constant 0.000000e+00 : f32
    %33 = vector.broadcast %cst : f32 to vector<2x32x256xf32>
    %34 = arith.maximumf %32, %33 : vector<2x32x256xf32>
    %cst_6 = arith.constant dense<0.000000e+00> : vector<2x32xf32>
    %35 = vector.multi_reduction <add>, %34, %cst_6 [2] : vector<2x32x256xf32> to vector<2x32xf32>
    %c0_i32 = arith.constant 0 : i32
    %36 = arith.cmpi eq, %arg1, %c0_i32 : i32
    %37 = arith.extui %36 : i1 to i32
    %c0_i32_7 = arith.constant 0 : i32
    %38 = arith.cmpi ne, %37, %c0_i32_7 : i32
    scf.if %38 {
      %cst_14 = arith.constant 0.000000e+00 : f32
      %45 = vector.broadcast %cst_14 : f32 to vector<2x32xf32>
      %c0_15 = arith.constant 0 : index
      %c0_16 = arith.constant 0 : index
      %46 = vector.load %arg12[%c0_15, %c0_16] : memref<2x32xf32, #tpu.memory_space<vmem>>, vector<2x32xf32>
      tpu.vector_store %arg12[%c0_15, %c0_16], %45 {strides = array<i32>} : memref<2x32xf32, #tpu.memory_space<vmem>>, vector<2x32xf32>,
    } else {
    }
    %c0_8 = arith.constant 0 : index
    %c0_9 = arith.constant 0 : index
    %39 = vector.load %arg12[%c0_8, %c0_9] : memref<2x32xf32, #tpu.memory_space<vmem>>, vector<2x32xf32>
    %40 = arith.addf %39, %35 : vector<2x32xf32>
    %c0_10 = arith.constant 0 : index
    %c0_11 = arith.constant 0 : index
    %41 = vector.load %arg12[%c0_10, %c0_11] : memref<2x32xf32, #tpu.memory_space<vmem>>, vector<2x32xf32>
    tpu.vector_store %arg12[%c0_10, %c0_11], %40 {strides = array<i32>} : memref<2x32xf32, #tpu.memory_space<vmem>>, vector<2x32xf32>,
    %c0_i32_12 = arith.constant 0 : i32
    %42 = arith.cmpi eq, %arg1, %c0_i32_12 : i32
    %43 = arith.extui %42 : i1 to i32
    %c0_i32_13 = arith.constant 0 : i32
    %44 = arith.cmpi ne, %43, %c0_i32_13 : i32
    scf.if %44 {
      %c0_14 = arith.constant 0 : index
      %c0_15 = arith.constant 0 : index
      %45 = vector.load %arg12[%c0_14, %c0_15] : memref<2x32xf32, #tpu.memory_space<vmem>>, vector<2x32xf32>
      %cst_16 = arith.constant 3.906250e-03 : f32
      %46 = vector.broadcast %cst_16 : f32 to vector<2x32xf32>
      %47 = arith.mulf %45, %46 : vector<2x32xf32>
      %c0_17 = arith.constant 0 : index
      %c0_18 = arith.constant 0 : index
      %48 = vector.load %arg11[%c0_17, %c0_18] : memref<2x32xf32, #tpu.memory_space<vmem>>, vector<2x32xf32>
      tpu.vector_store %arg11[%c0_17, %c0_18], %47 {strides = array<i32>} : memref<2x32xf32, #tpu.memory_space<vmem>>, vector<2x32xf32>,
      %c0_19 = arith.constant 0 : index
      %c0_20 = arith.constant 0 : index
      %49 = vector.load %arg5[%c0_19, %c0_20] : memref<32x256xf32, #tpu.memory_space<vmem>>, vector<32x256xf32>
      %cst_21 = arith.constant dense<0.000000e+00> : vector<2x256xf32>
      %50 = tpu.matmul %47, %49, %cst_21 {dimension_numbers = #tpu.dot_dimension_numbers<[1], [0], [0], [1], [0, 0, 1, 1], [], []>} : vector<2x32xf32>, vector<32x256xf32>, vector<2x256xf32> -> vector<2x256xf32>
      %c0_22 = arith.constant 0 : index
      %c0_23 = arith.constant 0 : index
      %51 = vector.load %arg6[%c0_22, %c0_23] : memref<1x256xf32, #tpu.memory_space<vmem>>, vector<1x256xf32>
      %52 = vector.broadcast %51 : vector<1x256xf32> to vector<2x256xf32>
      %53 = arith.addf %50, %52 : vector<2x256xf32>
      %54 = vector.extract_strided_slice %53 {offsets = [0, 0], sizes = [2, 128], strides = [1, 1]} : vector<2x256xf32> to vector<2x128xf32>
      %c0_24 = arith.constant 0 : index
      %c0_25 = arith.constant 0 : index
      %55 = vector.load %arg9[%c0_24, %c0_25] : memref<2x128xf32, #tpu.memory_space<vmem>>, vector<2x128xf32>
      tpu.vector_store %arg9[%c0_24, %c0_25], %54 {strides = array<i32>} : memref<2x128xf32, #tpu.memory_space<vmem>>, vector<2x128xf32>,
      %56 = vector.extract_strided_slice %53 {offsets = [0, 128], sizes = [2, 128], strides = [1, 1]} : vector<2x256xf32> to vector<2x128xf32>
      %cst_26 = arith.constant 0.000000e+00 : f32
      %57 = vector.broadcast %cst_26 : f32 to vector<2x128xf32>
      %58 = arith.maximumf %56, %57 : vector<2x128xf32>
      %c0_27 = arith.constant 0 : index
      %c0_28 = arith.constant 0 : index
      %59 = vector.load %arg7[%c0_27, %c0_28] : memref<128x128xf32, #tpu.memory_space<vmem>>, vector<128x128xf32>
      %cst_29 = arith.constant dense<0.000000e+00> : vector<2x128xf32>
      %60 = tpu.matmul %58, %59, %cst_29 {dimension_numbers = #tpu.dot_dimension_numbers<[1], [0], [0], [1], [0, 0, 1, 1], [], []>} : vector<2x128xf32>, vector<128x128xf32>, vector<2x128xf32> -> vector<2x128xf32>
      %c0_30 = arith.constant 0 : index
      %c0_31 = arith.constant 0 : index
      %61 = vector.load %arg8[%c0_30, %c0_31] : memref<1x128xf32, #tpu.memory_space<vmem>>, vector<1x128xf32>
      %62 = vector.broadcast %61 : vector<1x128xf32> to vector<2x128xf32>
      %63 = arith.addf %60, %62 : vector<2x128xf32>
      %c0_32 = arith.constant 0 : index
      %c0_33 = arith.constant 0 : index
      %64 = vector.load %arg10[%c0_32, %c0_33] : memref<2x128xf32, #tpu.memory_space<vmem>>, vector<2x128xf32>
      tpu.vector_store %arg10[%c0_32, %c0_33], %63 {strides = array<i32>} : memref<2x128xf32, #tpu.memory_space<vmem>>, vector<2x128xf32>,
    } else {
    }
    return
  }
  func.func @transform_0(%arg0: i32, %arg1: i32) -> (i32, i32, i32) {
    %c0_i32 = arith.constant 0 : i32
    %c0_i32_0 = arith.constant 0 : i32
    return %arg0, %c0_i32, %arg1 : i32, i32, i32
  }
  func.func @transform_1(%arg0: i32, %arg1: i32) -> (i32, i32) {
    %c0_i32 = arith.constant 0 : i32
    %c0_i32_0 = arith.constant 0 : i32
    %c0_i32_1 = arith.constant 0 : i32
    return %c0_i32, %c0_i32_0 : i32, i32
  }
  func.func @transform_2(%arg0: i32, %arg1: i32) -> (i32, i32) {
    %c0_i32 = arith.constant 0 : i32
    %c0_i32_0 = arith.constant 0 : i32
    %c0_i32_1 = arith.constant 0 : i32
    return %c0_i32, %c0_i32_0 : i32, i32
  }
  func.func @transform_3(%arg0: i32, %arg1: i32) -> (i32, i32) {
    %c0_i32 = arith.constant 0 : i32
    %c0_i32_0 = arith.constant 0 : i32
    %c0_i32_1 = arith.constant 0 : i32
    return %c0_i32, %c0_i32_0 : i32, i32
  }
  func.func @transform_4(%arg0: i32, %arg1: i32) -> (i32, i32) {
    %c0_i32 = arith.constant 0 : i32
    %c0_i32_0 = arith.constant 0 : i32
    %c0_i32_1 = arith.constant 0 : i32
    return %c0_i32, %c0_i32_0 : i32, i32
  }
  func.func @transform_5(%arg0: i32, %arg1: i32) -> (i32, i32) {
    %c0_i32 = arith.constant 0 : i32
    %c0_i32_0 = arith.constant 0 : i32
    %c0_i32_1 = arith.constant 0 : i32
    return %c0_i32, %c0_i32_0 : i32, i32
  }
  func.func @transform_6(%arg0: i32, %arg1: i32) -> (i32, i32) {
    %c0_i32 = arith.constant 0 : i32
    %c0_i32_0 = arith.constant 0 : i32
    %c0_i32_1 = arith.constant 0 : i32
    return %c0_i32, %c0_i32_0 : i32, i32
  }
  func.func @transform_7(%arg0: i32, %arg1: i32) -> (i32, i32) {
    %c0_i32 = arith.constant 0 : i32
    %c0_i32_0 = arith.constant 0 : i32
    return %arg0, %c0_i32 : i32, i32
  }
  func.func @transform_8(%arg0: i32, %arg1: i32) -> (i32, i32) {
    %c0_i32 = arith.constant 0 : i32
    %c0_i32_0 = arith.constant 0 : i32
    return %arg0, %c0_i32 : i32, i32
  }
  func.func @transform_9(%arg0: i32, %arg1: i32) -> (i32, i32) {
    %c0_i32 = arith.constant 0 : i32
    %c0_i32_0 = arith.constant 0 : i32
    return %arg0, %c0_i32 : i32, i32
  }
}

</mosaic_0001>

<llo_original>
// kernel: tpu_custom_call.1
$region0: #{tpu_custom_call.1}
  #allocation0 [shape = 'u32[]', space=smem, size = 0x4, offset = 0x4, fixed_abs, tag = 'smem constant byte address 0x4 - core index']
  #allocation1 [shape = 'u32[144,128]{1,0:T(1,128)}', space=vmem, size = 0x12000, scoped, tag = 'internal scratch']
  #allocation2 [shape = 'f32[2,32]{1,0:T(2,128)}', space=vmem, size = 0x400, scoped, tag = 'scratch operand']
  %s0 = inlined_call_operand.vmem [shape: f32[2,4,256], index: 0, kind: input, shape index: {}]
  %s1 = inlined_call_operand.vmem [shape: f32[32,4], index: 1, kind: input, shape index: {}]
  %s2 = inlined_call_operand.vmem [shape: f32[32,1], index: 2, kind: input, shape index: {}]
  %s3 = inlined_call_operand.vmem [shape: f32[32,256], index: 3, kind: input, shape index: {}]
  %s4 = inlined_call_operand.vmem [shape: f32[1,256], index: 4, kind: input, shape index: {}]
  %s5 = inlined_call_operand.hbm [shape: f32[128,128], index: 5, kind: input, shape index: {}]
  %s6 = inlined_call_operand.vmem [shape: f32[1,128], index: 6, kind: input, shape index: {}]
  %s7 = inlined_call_operand.hbm [shape: f32[2,128], index: 7, kind: output, shape index: {0}]
  %s8 = inlined_call_operand.hbm [shape: f32[2,128], index: 8, kind: output, shape index: {1}]
  %s9 = inlined_call_operand.hbm [shape: f32[2,32], index: 9, kind: output, shape index: {2}]
  %10 = xla_tuple %s7, %s8, %s9
  %s11 = sld [smem:[#allocation0]]
  $region66: #{tpu_custom_call.1} parent=0
    _
  %s13 = ssub.s32 1, %s11
  %s14 = scalar_select 0, %s13, %s11
  $region1: #{tpu_custom_call.1} parent=0
    #allocation3 [shape = 'u8[65536]{0}', space=vmem, size = 0x10000, scoped, tag = 'input window, operand 5, single buffered']
    #allocation4 [shape = 's32[1]{0}', space=sflag, size = 0x4, scoped, tag = 'scoped memory for tpu_custom_call.1']
    #allocation5 [shape = 's32[1]{0}', space=sflag, size = 0x4, scoped, tag = 'scoped memory for tpu_custom_call.1']
    #allocation6 [shape = 'u8[1024]{0}', space=vmem, size = 0x400, scoped, tag = 'output window, operand 0, single buffered']
    #allocation7 [shape = 'u8[1024]{0}', space=vmem, size = 0x400, scoped, tag = 'output window, operand 1, single buffered']
    #allocation8 [shape = 's32[1]{0}', space=sflag, size = 0x4, scoped, tag = 'scoped memory for tpu_custom_call.1']
    #allocation9 [shape = 'u8[1024]{0}', space=vmem, size = 0x400, scoped, tag = 'output window, operand 2, single buffered']
    %15 = vsyncpa [#allocation4], 0
    %16 = vsyncpa [#allocation5], 0
    %17 = vsyncpa [#allocation8], 0
    // Predicated region
    $region2: #{tpu_custom_call.1} parent=1 // pred_check
      _
    $region3: #{tpu_custom_call.1} parent=1 // pred_check_branch
      %19 = sbr.rel (0) target = $region5
    $region4: #{tpu_custom_call.1} parent=1 // pred_region
      _
    $region5: #{tpu_custom_call.1} parent=1 // pred_fallthru
      _
    // Predicated region
    $region6: #{tpu_custom_call.1} parent=1 // pred_check
      _
    $region7: #{tpu_custom_call.1} parent=1 // pred_check_branch
      %21 = sbr.rel (0) target = $region9
    $region8: #{tpu_custom_call.1} parent=1 // pred_region
      _
    $region9: #{tpu_custom_call.1} parent=1 // pred_fallthru
      _
    // Predicated region
    $region10: #{tpu_custom_call.1} parent=1 // pred_check
      _
    $region11: #{tpu_custom_call.1} parent=1 // pred_check_branch
      %23 = sbr.rel (0) target = $region13
    $region12: #{tpu_custom_call.1} parent=1 // pred_region
      _
    $region13: #{tpu_custom_call.1} parent=1 // pred_fallthru
      _
    // Predicated region
    $region14: #{tpu_custom_call.1} parent=1 // pred_check
      _
    $region15: #{tpu_custom_call.1} parent=1 // pred_check_branch
      %25 = sbr.rel (0) target = $region17
    $region16: #{tpu_custom_call.1} parent=1 // pred_region
      _
    $region17: #{tpu_custom_call.1} parent=1 // pred_fallthru
      _
    // Predicated region
    $region18: #{tpu_custom_call.1} parent=1 // pred_check
      _
    $region19: #{tpu_custom_call.1} parent=1 // pred_check_branch
      %27 = sbr.rel (0) target = $region21
    $region20: #{tpu_custom_call.1} parent=1 // pred_region
      _
    $region21: #{tpu_custom_call.1} parent=1 // pred_fallthru
      _
    // Predicated region
    $region22: #{tpu_custom_call.1} parent=1 // pred_check
      _
    $region23: #{tpu_custom_call.1} parent=1 // pred_check_branch
      %29 = sbr.rel (0) target = $region25
    $region24: #{tpu_custom_call.1} parent=1 // pred_region
      %s31 = ssub.s32 2048, 2048
      %32 = vsyncadd [#allocation4], %s31
      %s33 = sshll.u32 [#allocation3], 4
      %s34 = int_to_ptr.vmem [resolvable:$true] %s33
      %39 = dma.hbm_to_vmem [thread:$0]  %s5, 2048, %s34, [#allocation4], 128, 128, 8
    $region25: #{tpu_custom_call.1} parent=1 // pred_fallthru
      _
    // Predicated region
    $region26: #{tpu_custom_call.1} parent=1 // pred_check
      _
    $region27: #{tpu_custom_call.1} parent=1 // pred_check_branch
      %41 = sbr.rel (0) target = $region29
    $region28: #{tpu_custom_call.1} parent=1 // pred_region
      _
    $region29: #{tpu_custom_call.1} parent=1 // pred_fallthru
      _
    // Predicated region
    $region30: #{tpu_custom_call.1} parent=1 // pred_check
      _
    $region31: #{tpu_custom_call.1} parent=1 // pred_check_branch
      %43 = sbr.rel (0) target = $region33
    $region32: #{tpu_custom_call.1} parent=1 // pred_region
      %44 = dma.done [#allocation4], 2048
    $region33: #{tpu_custom_call.1} parent=1 // pred_fallthru
      _
    %v45 = vld [vmem:[%s0] sm:$0xff]
    %v46 = vld [vmem:[%s0 + $0x8] sm:$0xff]
    %v47 = vld [vmem:[%s1] sm:$0xff]
    %v48 = vld [vmem:[%s1 + $0x8] sm:$0xff]
    %v49 = vld [vmem:[%s1 + $0x10] sm:$0xff]
    %v50 = vld [vmem:[%s1 + $0x18] sm:$0xff]
    %v51 = vld [vmem:[%s2] sm:$0xff]
    %v52 = vld [vmem:[%s2 + $0x8] sm:$0xff]
    %v53 = vld [vmem:[%s2 + $0x10] sm:$0xff]
    %v54 = vld [vmem:[%s2 + $0x18] sm:$0xff]
    %56 = vset.pattern.permute.xlu0 0
    %57 = vperm.xlu0 %56, %v47
    %v58 = vpop.permute.xlu0 %57
    %61 = vset.pattern.permute.xlu0 0
    %62 = vperm.xlu0 %61, %v48
    %v63 = vpop.permute.xlu0 %62
    %66 = vset.pattern.permute.xlu0 0
    %67 = vperm.xlu0 %66, %v49
    %v68 = vpop.permute.xlu0 %67
    %71 = vset.pattern.permute.xlu0 0
    %72 = vperm.xlu0 %71, %v50
    %v73 = vpop.permute.xlu0 %72
    %v77 = vlaneseq
    %v78 = vshrl.u32 %v77, 7
    %v79 = vsub.s32 0, %v78
    %v80 = vrot.slane %v45, %v79
    %v81 = vlaneseq
    %v82 = vshrl.u32 %v81, 7
    %v83 = vsub.s32 4, %v82
    %v84 = vrot.slane %v45, %v83
    %v85 = vlaneseq
    %v86 = vshrl.u32 %v85, 7
    %v87 = vsub.s32 0, %v86
    %v88 = vrot.slane %v46, %v87
    %v89 = vlaneseq
    %v90 = vshrl.u32 %v89, 7
    %v91 = vsub.s32 4, %v90
    %v92 = vrot.slane %v46, %v91
    %v97 = vlaneseq
    %v98 = vshrl.u32 %v97, 7
    %v99 = vsub.s32 0, %v98
    %v100 = vrot.slane %v80, %v99
    %v101 = vlaneseq
    %v102 = vshrl.u32 %v101, 7
    %v103 = vsub.s32 0, %v102
    %v104 = vrot.slane %v84, %v103
    %v105 = vlaneseq
    %v106 = vshrl.u32 %v105, 7
    %v107 = vsub.s32 0, %v106
    %v108 = vrot.slane %v88, %v107
    %v109 = vlaneseq
    %v110 = vshrl.u32 %v109, 7
    %v111 = vsub.s32 0, %v110
    %v112 = vrot.slane %v92, %v111
    %v113 = vmul.f32 %v58, %v100
    %v114 = vmul.f32 %v58, %v104
    %v115 = vmul.f32 %v63, %v100
    %v116 = vmul.f32 %v63, %v104
    %v117 = vmul.f32 %v68, %v100
    %v118 = vmul.f32 %v68, %v104
    %v119 = vmul.f32 %v73, %v100
    %v120 = vmul.f32 %v73, %v104
    %v121 = vmul.f32 %v58, %v108
    %v122 = vmul.f32 %v58, %v112
    %v123 = vmul.f32 %v63, %v108
    %v124 = vmul.f32 %v63, %v112
    %v125 = vmul.f32 %v68, %v108
    %v126 = vmul.f32 %v68, %v112
    %v127 = vmul.f32 %v73, %v108
    %v128 = vmul.f32 %v73, %v112
    %130 = vset.pattern.permute.xlu0 0
    %131 = vperm.xlu0 %130, %v51
    %v132 = vpop.permute.xlu0 %131
    %135 = vset.pattern.permute.xlu0 0
    %136 = vperm.xlu0 %135, %v52
    %v137 = vpop.permute.xlu0 %136
    %140 = vset.pattern.permute.xlu0 0
    %141 = vperm.xlu0 %140, %v53
    %v142 = vpop.permute.xlu0 %141
    %145 = vset.pattern.permute.xlu0 0
    %146 = vperm.xlu0 %145, %v54
    %v147 = vpop.permute.xlu0 %146
    %v149 = vadd.f32 %v132, %v113
    %v150 = vadd.f32 %v132, %v114
    %v151 = vadd.f32 %v137, %v115
    %v152 = vadd.f32 %v137, %v116
    %v153 = vadd.f32 %v142, %v117
    %v154 = vadd.f32 %v142, %v118
    %v155 = vadd.f32 %v147, %v119
    %v156 = vadd.f32 %v147, %v120
    %v157 = vadd.f32 %v132, %v121
    %v158 = vadd.f32 %v132, %v122
    %v159 = vadd.f32 %v137, %v123
    %v160 = vadd.f32 %v137, %v124
    %v161 = vadd.f32 %v142, %v125
    %v162 = vadd.f32 %v142, %v126
    %v163 = vadd.f32 %v147, %v127
    %v164 = vadd.f32 %v147, %v128
    %165 = vset.pattern.permute.xlu0 1
    %166 = vperm.xlu0 %165, %v47
    %v167 = vpop.permute.xlu0 %166
    %169 = vset.pattern.permute.xlu0 1
    %170 = vperm.xlu0 %169, %v48
    %v171 = vpop.permute.xlu0 %170
    %173 = vset.pattern.permute.xlu0 1
    %174 = vperm.xlu0 %173, %v49
    %v175 = vpop.permute.xlu0 %174
    %177 = vset.pattern.permute.xlu0 1
    %178 = vperm.xlu0 %177, %v50
    %v179 = vpop.permute.xlu0 %178
    %v181 = vlaneseq
    %v182 = vshrl.u32 %v181, 7
    %v183 = vsub.s32 1, %v182
    %v184 = vrot.slane %v45, %v183
    %v185 = vlaneseq
    %v186 = vshrl.u32 %v185, 7
    %v187 = vsub.s32 5, %v186
    %v188 = vrot.slane %v45, %v187
    %v189 = vlaneseq
    %v190 = vshrl.u32 %v189, 7
    %v191 = vsub.s32 1, %v190
    %v192 = vrot.slane %v46, %v191
    %v193 = vlaneseq
    %v194 = vshrl.u32 %v193, 7
    %v195 = vsub.s32 5, %v194
    %v196 = vrot.slane %v46, %v195
    %v201 = vlaneseq
    %v202 = vshrl.u32 %v201, 7
    %v203 = vsub.s32 1, %v202
    %v204 = vrot.slane %v184, %v203
    %v205 = vlaneseq
    %v206 = vshrl.u32 %v205, 7
    %v207 = vsub.s32 1, %v206
    %v208 = vrot.slane %v188, %v207
    %v209 = vlaneseq
    %v210 = vshrl.u32 %v209, 7
    %v211 = vsub.s32 1, %v210
    %v212 = vrot.slane %v192, %v211
    %v213 = vlaneseq
    %v214 = vshrl.u32 %v213, 7
    %v215 = vsub.s32 1, %v214
    %v216 = vrot.slane %v196, %v215
    %v217 = vmul.f32 %v167, %v204
    %v218 = vmul.f32 %v167, %v208
    %v219 = vmul.f32 %v171, %v204
    %v220 = vmul.f32 %v171, %v208
    %v221 = vmul.f32 %v175, %v204
    %v222 = vmul.f32 %v175, %v208
    %v223 = vmul.f32 %v179, %v204
    %v224 = vmul.f32 %v179, %v208
    %v225 = vmul.f32 %v167, %v212
    %v226 = vmul.f32 %v167, %v216
    %v227 = vmul.f32 %v171, %v212
    %v228 = vmul.f32 %v171, %v216
    %v229 = vmul.f32 %v175, %v212
    %v230 = vmul.f32 %v175, %v216
    %v231 = vmul.f32 %v179, %v212
    %v232 = vmul.f32 %v179, %v216
    %v233 = vadd.f32 %v149, %v217
    %v234 = vadd.f32 %v150, %v218
    %v235 = vadd.f32 %v151, %v219
    %v236 = vadd.f32 %v152, %v220
    %v237 = vadd.f32 %v153, %v221
    %v238 = vadd.f32 %v154, %v222
    %v239 = vadd.f32 %v155, %v223
    %v240 = vadd.f32 %v156, %v224
    %v241 = vadd.f32 %v157, %v225
    %v242 = vadd.f32 %v158, %v226
    %v243 = vadd.f32 %v159, %v227
    %v244 = vadd.f32 %v160, %v228
    %v245 = vadd.f32 %v161, %v229
    %v246 = vadd.f32 %v162, %v230
    %v247 = vadd.f32 %v163, %v231
    %v248 = vadd.f32 %v164, %v232
    %249 = vset.pattern.permute.xlu0 2
    %250 = vperm.xlu0 %249, %v47
    %v251 = vpop.permute.xlu0 %250
    %253 = vset.pattern.permute.xlu0 2
    %254 = vperm.xlu0 %253, %v48
    %v255 = vpop.permute.xlu0 %254
    %257 = vset.pattern.permute.xlu0 2
    %258 = vperm.xlu0 %257, %v49
    %v259 = vpop.permute.xlu0 %258
    %261 = vset.pattern.permute.xlu0 2
    %262 = vperm.xlu0 %261, %v50
    %v263 = vpop.permute.xlu0 %262
    %v265 = vlaneseq
    %v266 = vshrl.u32 %v265, 7
    %v267 = vsub.s32 2, %v266
    %v268 = vrot.slane %v45, %v267
    %v269 = vlaneseq
    %v270 = vshrl.u32 %v269, 7
    %v271 = vsub.s32 6, %v270
    %v272 = vrot.slane %v45, %v271
    %v273 = vlaneseq
    %v274 = vshrl.u32 %v273, 7
    %v275 = vsub.s32 2, %v274
    %v276 = vrot.slane %v46, %v275
    %v277 = vlaneseq
    %v278 = vshrl.u32 %v277, 7
    %v279 = vsub.s32 6, %v278
    %v280 = vrot.slane %v46, %v279
    %v285 = vlaneseq
    %v286 = vshrl.u32 %v285, 7
    %v287 = vsub.s32 2, %v286
    %v288 = vrot.slane %v268, %v287
    %v289 = vlaneseq
    %v290 = vshrl.u32 %v289, 7
    %v291 = vsub.s32 2, %v290
    %v292 = vrot.slane %v272, %v291
    %v293 = vlaneseq
    %v294 = vshrl.u32 %v293, 7
    %v295 = vsub.s32 2, %v294
    %v296 = vrot.slane %v276, %v295
    %v297 = vlaneseq
    %v298 = vshrl.u32 %v297, 7
    %v299 = vsub.s32 2, %v298
    %v300 = vrot.slane %v280, %v299
    %v301 = vmul.f32 %v251, %v288
    %v302 = vmul.f32 %v251, %v292
    %v303 = vmul.f32 %v255, %v288
    %v304 = vmul.f32 %v255, %v292
    %v305 = vmul.f32 %v259, %v288
    %v306 = vmul.f32 %v259, %v292
    %v307 = vmul.f32 %v263, %v288
    %v308 = vmul.f32 %v263, %v292
    %v309 = vmul.f32 %v251, %v296
    %v310 = vmul.f32 %v251, %v300
    %v311 = vmul.f32 %v255, %v296
    %v312 = vmul.f32 %v255, %v300
    %v313 = vmul.f32 %v259, %v296
    %v314 = vmul.f32 %v259, %v300
    %v315 = vmul.f32 %v263, %v296
    %v316 = vmul.f32 %v263, %v300
    %v317 = vadd.f32 %v233, %v301
    %v318 = vadd.f32 %v234, %v302
    %v319 = vadd.f32 %v235, %v303
    %v320 = vadd.f32 %v236, %v304
    %v321 = vadd.f32 %v237, %v305
    %v322 = vadd.f32 %v238, %v306
    %v323 = vadd.f32 %v239, %v307
    %v324 = vadd.f32 %v240, %v308
    %v325 = vadd.f32 %v241, %v309
    %v326 = vadd.f32 %v242, %v310
    %v327 = vadd.f32 %v243, %v311
    %v328 = vadd.f32 %v244, %v312
    %v329 = vadd.f32 %v245, %v313
    %v330 = vadd.f32 %v246, %v314
    %v331 = vadd.f32 %v247, %v315
    %v332 = vadd.f32 %v248, %v316
    %333 = vset.pattern.permute.xlu0 3
    %334 = vperm.xlu0 %333, %v47
    %v335 = vpop.permute.xlu0 %334
    %337 = vset.pattern.permute.xlu0 3
    %338 = vperm.xlu0 %337, %v48
    %v339 = vpop.permute.xlu0 %338
    %341 = vset.pattern.permute.xlu0 3
    %342 = vperm.xlu0 %341, %v49
    %v343 = vpop.permute.xlu0 %342
    %345 = vset.pattern.permute.xlu0 3
    %346 = vperm.xlu0 %345, %v50
    %v347 = vpop.permute.xlu0 %346
    %v349 = vlaneseq
    %v350 = vshrl.u32 %v349, 7
    %v351 = vsub.s32 3, %v350
    %v352 = vrot.slane %v45, %v351
    %v353 = vlaneseq
    %v354 = vshrl.u32 %v353, 7
    %v355 = vsub.s32 7, %v354
    %v356 = vrot.slane %v45, %v355
    %v357 = vlaneseq
    %v358 = vshrl.u32 %v357, 7
    %v359 = vsub.s32 3, %v358
    %v360 = vrot.slane %v46, %v359
    %v361 = vlaneseq
    %v362 = vshrl.u32 %v361, 7
    %v363 = vsub.s32 7, %v362
    %v364 = vrot.slane %v46, %v363
    %v369 = vlaneseq
    %v370 = vshrl.u32 %v369, 7
    %v371 = vsub.s32 3, %v370
    %v372 = vrot.slane %v352, %v371
    %v373 = vlaneseq
    %v374 = vshrl.u32 %v373, 7
    %v375 = vsub.s32 3, %v374
    %v376 = vrot.slane %v356, %v375
    %v377 = vlaneseq
    %v378 = vshrl.u32 %v377, 7
    %v379 = vsub.s32 3, %v378
    %v380 = vrot.slane %v360, %v379
    %v381 = vlaneseq
    %v382 = vshrl.u32 %v381, 7
    %v383 = vsub.s32 3, %v382
    %v384 = vrot.slane %v364, %v383
    %v385 = vmul.f32 %v335, %v372
    %v386 = vmul.f32 %v335, %v376
    %v387 = vmul.f32 %v339, %v372
    %v388 = vmul.f32 %v339, %v376
    %v389 = vmul.f32 %v343, %v372
    %v390 = vmul.f32 %v343, %v376
    %v391 = vmul.f32 %v347, %v372
    %v392 = vmul.f32 %v347, %v376
    %v393 = vmul.f32 %v335, %v380
    %v394 = vmul.f32 %v335, %v384
    %v395 = vmul.f32 %v339, %v380
    %v396 = vmul.f32 %v339, %v384
    %v397 = vmul.f32 %v343, %v380
    %v398 = vmul.f32 %v343, %v384
    %v399 = vmul.f32 %v347, %v380
    %v400 = vmul.f32 %v347, %v384
    %v401 = vadd.f32 %v317, %v385
    %v402 = vadd.f32 %v318, %v386
    %v403 = vadd.f32 %v319, %v387
    %v404 = vadd.f32 %v320, %v388
    %v405 = vadd.f32 %v321, %v389
    %v406 = vadd.f32 %v322, %v390
    %v407 = vadd.f32 %v323, %v391
    %v408 = vadd.f32 %v324, %v392
    %v409 = vadd.f32 %v325, %v393
    %v410 = vadd.f32 %v326, %v394
    %v411 = vadd.f32 %v327, %v395
    %v412 = vadd.f32 %v328, %v396
    %v413 = vadd.f32 %v329, %v397
    %v414 = vadd.f32 %v330, %v398
    %v415 = vadd.f32 %v331, %v399
    %v416 = vadd.f32 %v332, %v400
    %v417 = vmax.f32 %v401, 0.0
    %v418 = vmax.f32 %v402, 0.0
    %v419 = vmax.f32 %v403, 0.0
    %v420 = vmax.f32 %v404, 0.0
    %v421 = vmax.f32 %v405, 0.0
    %v422 = vmax.f32 %v406, 0.0
    %v423 = vmax.f32 %v407, 0.0
    %v424 = vmax.f32 %v408, 0.0
    %v425 = vmax.f32 %v409, 0.0
    %v426 = vmax.f32 %v410, 0.0
    %v427 = vmax.f32 %v411, 0.0
    %v428 = vmax.f32 %v412, 0.0
    %v429 = vmax.f32 %v413, 0.0
    %v430 = vmax.f32 %v414, 0.0
    %v431 = vmax.f32 %v415, 0.0
    %v432 = vmax.f32 %v416, 0.0
    %v433 = vadd.f32 %v417, %v418
    %434 = vadd.xlane.f32.xlu0 %v433
    %v435 = vpop.xlane.xlu0 %434
    %v436 = vadd.f32 %v419, %v420
    %437 = vadd.xlane.f32.xlu0 %v436
    %v438 = vpop.xlane.xlu0 %437
    %v439 = vadd.f32 %v421, %v422
    %440 = vadd.xlane.f32.xlu0 %v439
    %v441 = vpop.xlane.xlu0 %440
    %v442 = vadd.f32 %v423, %v424
    %443 = vadd.xlane.f32.xlu0 %v442
    %v444 = vpop.xlane.xlu0 %443
    %v445 = vadd.f32 %v425, %v426
    %446 = vadd.xlane.f32.xlu0 %v445
    %v447 = vpop.xlane.xlu0 %446
    %v448 = vadd.f32 %v427, %v428
    %449 = vadd.xlane.f32.xlu0 %v448
    %v450 = vpop.xlane.xlu0 %449
    %v451 = vadd.f32 %v429, %v430
    %452 = vadd.xlane.f32.xlu0 %v451
    %v453 = vpop.xlane.xlu0 %452
    %v454 = vadd.f32 %v431, %v432
    %455 = vadd.xlane.f32.xlu0 %v454
    %v456 = vpop.xlane.xlu0 %455
    %p457 = scmp.eq.s32.totalorder 0, 0
    // Predicated region
    $region34: #{tpu_custom_call.1} parent=1 // pred_check
      %p458 = pneg %p457
    $region35: #{tpu_custom_call.1} parent=1 // pred_check_branch
      %460 = sbr.rel (%p458) target = $region37
    $region36: #{tpu_custom_call.1} parent=1 // pred_region
      %vm461 = vcmask 254976
      %462 = vst.msk [vmem:[#allocation2] sm:$0x3] %vm461, 0.0
    $region37: #{tpu_custom_call.1} parent=1 // pred_fallthru
      _
    %v463 = vld [vmem:[#allocation2] sm:$0x3]
    %v472 = vlaneseq
    %v473 = vand.u32 %v472, 127
    %v474 = vlaneseq
    %v475 = vshrl.u32 %v474, 7
    %v476 = vsub.s32 %v473, %v475
    %v477 = vrot.slane %v435, %v476
    %v478 = vadd.s32 %v473, 4294967288
    %v479 = vlaneseq
    %v480 = vshrl.u32 %v479, 7
    %v481 = vsub.s32 %v478, %v480
    %v482 = vrot.slane %v438, %v481
    %vm483 = vcmask 130112
    %v484 = vsel %vm483, %v482, %v477
    %v485 = vadd.s32 %v473, 4294967280
    %v486 = vlaneseq
    %v487 = vshrl.u32 %v486, 7
    %v488 = vsub.s32 %v485, %v487
    %v489 = vrot.slane %v441, %v488
    %vm490 = vcmask 195712
    %v491 = vsel %vm490, %v489, %v484
    %v492 = vadd.s32 %v473, 4294967272
    %v493 = vlaneseq
    %v494 = vshrl.u32 %v493, 7
    %v495 = vsub.s32 %v492, %v494
    %v496 = vrot.slane %v444, %v495
    %vm497 = vcmask 261312
    %v498 = vsel %vm497, %v496, %v491
    %v499 = vlaneseq
    %v500 = vshrl.u32 %v499, 7
    %v501 = vsub.s32 %v473, %v500
    %v502 = vrot.slane %v447, %v501
    %v503 = vlaneseq
    %v504 = vshrl.u32 %v503, 7
    %v505 = vsub.s32 %v478, %v504
    %v506 = vrot.slane %v450, %v505
    %v507 = vsel %vm483, %v506, %v502
    %v508 = vlaneseq
    %v509 = vshrl.u32 %v508, 7
    %v510 = vsub.s32 %v485, %v509
    %v511 = vrot.slane %v453, %v510
    %v512 = vsel %vm490, %v511, %v507
    %v513 = vlaneseq
    %v514 = vshrl.u32 %v513, 7
    %v515 = vsub.s32 %v492, %v514
    %v516 = vrot.slane %v456, %v515
    %v517 = vsel %vm497, %v516, %v512
    %vm518 = vcmask 1041409
    %v519 = vsel %vm518, %v517, %v498
    %v521 = vadd.f32 %v463, %v519
    %vm522 = vcmask 254976
    %523 = vst.msk [vmem:[#allocation2] sm:$0x3] %vm522, %v521
    // Predicated region
    $region38: #{tpu_custom_call.1} parent=1 // pred_check
      %p524 = pneg %p457
    $region39: #{tpu_custom_call.1} parent=1 // pred_check_branch
      %526 = sbr.rel (%p524) target = $region41
    $region40: #{tpu_custom_call.1} parent=1 // pred_region
      %v527 = vld [vmem:[#allocation2] sm:$0x3]
      %v528 = vmul.f32 %v527, 0.00390625
      %529 = vst.msk [vmem:[#allocation9] sm:$0x3] %vm522, %v528
      %v530 = vld [vmem:[%s3] sm:$0xff]
      %v531 = vld [vmem:[%s3 + $0x8] sm:$0xff]
      %v532 = vld [vmem:[%s3 + $0x10] sm:$0xff]
      %v533 = vld [vmem:[%s3 + $0x18] sm:$0xff]
      %v534 = vld [vmem:[%s3 + $0x20] sm:$0xff]
      %v535 = vld [vmem:[%s3 + $0x28] sm:$0xff]
      %v536 = vld [vmem:[%s3 + $0x30] sm:$0xff]
      %v537 = vld [vmem:[%s3 + $0x38] sm:$0xff]
      %v538 = vld [vmem:[%s4] sm:$0x3]
      %v540 = vlaneseq
      %v541 = vshrl.u32 %v540, 7
      %v542 = vsub.s32 0, %v541
      %v543 = vrot.slane %v538, %v542
      %v544 = vlaneseq
      %v545 = vshrl.u32 %v544, 7
      %v546 = vsub.s32 1, %v545
      %v547 = vrot.slane %v538, %v546
      %vm550 = vcmask 261120
      %v552 = vsel %vm550, %v528, 0
      %554 = vmatprep.subr.mxu0 %v531
      %555 = vmatpush1.msra.mxu0 %v530
      %556 = vmatprep.subr.mxu0 %v533
      %557 = vmatpush1.msra.mxu0 %v532
      %558 = vmatprep.subr.mxu0 %v535
      %559 = vmatpush1.msra.mxu0 %v534
      %560 = vmatprep.subr.mxu0 %v537
      %561 = vmatpush1.msra.mxu0 %v536
      %562 = vmatprep.subr.mxu0 0.0
      %563 = vmatpush1.msra.mxu0 0.0
      %564 = vmatprep.subr.mxu0 0.0
      %565 = vmatpush1.msra.mxu0 0.0
      %566 = vmatprep.subr.mxu0 0.0
      %567 = vmatpush1.msra.mxu0 0.0
      %568 = vmatprep.subr.mxu0 0.0
      %569 = vmatpush1.msra.mxu0 0.0
      %570 = vmatprep.subr.mxu0 0.0
      %571 = vmatpush1.msra.mxu0 0.0
      %572 = vmatprep.subr.mxu0 0.0
      %573 = vmatpush1.msra.mxu0 0.0
      %574 = vmatprep.subr.mxu0 0.0
      %575 = vmatpush1.msra.mxu0 0.0
      %576 = vmatprep.subr.mxu0 0.0
      %577 = vmatpush1.msra.mxu0 0.0
      %578 = vmatprep.subr.mxu0 0.0
      %579 = vmatpush1.msra.mxu0 0.0
      %580 = vmatprep.subr.mxu0 0.0
      %581 = vmatpush1.msra.mxu0 0.0
      %582 = vmatprep.subr.mxu0 0.0
      %583 = vmatpush1.msra.mxu0 0.0
      %584 = vmatprep.subr.mxu0 0.0
      %585 = vmatpush1.msra.mxu0 0.0
      %586 = vmatprep.subr.mxu0 0.0
      %587 = vmatpush1.msra.mxu0 0.0
      %588 = vmatprep.subr.mxu0 0.0
      %589 = vmatpush1.msra.mxu0 0.0
      %590 = vmatprep.subr.mxu0 0.0
      %591 = vmatpush1.msra.mxu0 0.0
      %592 = vmatprep.subr.mxu0 0.0
      %593 = vmatpush1.msra.mxu0 0.0
      %594 = vmatprep.subr.mxu0 0.0
      %595 = vmatpush1.msra.mxu0 0.0
      %596 = vmatprep.subr.mxu0 0.0
      %597 = vmatpush1.msra.mxu0 0.0
      %598 = vmatprep.subr.mxu0 0.0
      %599 = vmatpush1.msra.mxu0 0.0
      %600 = vmatprep.subr.mxu0 0.0
      %601 = vmatpush1.msra.mxu0 0.0
      %602 = vmatprep.subr.mxu0 0.0
      %603 = vmatpush1.msra.mxu0 0.0
      %604 = vmatprep.subr.mxu0 0.0
      %605 = vmatpush1.msra.mxu0 0.0
      %606 = vmatprep.subr.mxu0 0.0
      %607 = vmatpush1.msra.mxu0 0.0
      %608 = vmatprep.subr.mxu0 0.0
      %609 = vmatpush1.msra.mxu0 0.0
      %610 = vmatprep.subr.mxu0 0.0
      %611 = vmatpush1.msra.mxu0 0.0
      %612 = vmatprep.subr.mxu0 0.0
      %613 = vmatpush1.msra.mxu0 0.0
      %614 = vmatprep.subr.mxu0 0.0
      %615 = vmatpush1.msra.mxu0 0.0
      %616 = vmatprep.subr.mxu0 0.0
      %617 = vmatpush1.msra.mxu0 0.0
      %618 = vmatprep.mubr.f32.mxu0 0.0
      %619 = vmatmul.mubr.f32.gmra.mrb[0].mxu0 %v552
      %v620 = vpop.f32.mrb[0].mxu0
      %v621 = vadd.f32 %v543, %v620
      %v622 = vpop.f32.mrb[0].mxu0
      %v623 = vadd.f32 %v547, %v622
      %624 = vdwg.mxu0
      %625 = vst [vmem:[#allocation6] sm:$0x3] %v621
      %v626 = vmax.f32 %v623, 0.0
      %v627 = vld [vmem:[#allocation3] sm:$0xff]
      %v628 = vld [vmem:[#allocation3 + $0x8] sm:$0xff]
      %v629 = vld [vmem:[#allocation3 + $0x10] sm:$0xff]
      %v630 = vld [vmem:[#allocation3 + $0x18] sm:$0xff]
      %v631 = vld [vmem:[#allocation3 + $0x20] sm:$0xff]
      %v632 = vld [vmem:[#allocation3 + $0x28] sm:$0xff]
      %v633 = vld [vmem:[#allocation3 + $0x30] sm:$0xff]
      %v634 = vld [vmem:[#allocation3 + $0x38] sm:$0xff]
      %v635 = vld [vmem:[#allocation3 + $0x40] sm:$0xff]
      %v636 = vld [vmem:[#allocation3 + $0x48] sm:$0xff]
      %v637 = vld [vmem:[#allocation3 + $0x50] sm:$0xff]
      %v638 = vld [vmem:[#allocation3 + $0x58] sm:$0xff]
      %v639 = vld [vmem:[#allocation3 + $0x60] sm:$0xff]
      %v640 = vld [vmem:[#allocation3 + $0x68] sm:$0xff]
      %v641 = vld [vmem:[#allocation3 + $0x70] sm:$0xff]
      %v642 = vld [vmem:[#allocation3 + $0x78] sm:$0xff]
      %v643 = vld [vmem:[%s6] sm:$0x1]
      %v645 = vlaneseq
      %v646 = vshrl.u32 %v645, 7
      %v647 = vsub.s32 0, %v646
      %v648 = vrot.slane %v643, %v647
      %650 = vmatprep.subr.mxu0 0.0
      %651 = vmatpush1.msra.mxu0 %v627
      %652 = vmatprep.subr.mxu0 0.0
      %653 = vmatpush1.msra.mxu0 %v628
      %654 = vmatprep.subr.mxu0 0.0
      %655 = vmatpush1.msra.mxu0 %v629
      %656 = vmatprep.subr.mxu0 0.0
      %657 = vmatpush1.msra.mxu0 %v630
      %658 = vmatprep.subr.mxu0 0.0
      %659 = vmatpush1.msra.mxu0 %v631
      %660 = vmatprep.subr.mxu0 0.0
      %661 = vmatpush1.msra.mxu0 %v632
      %662 = vmatprep.subr.mxu0 0.0
      %663 = vmatpush1.msra.mxu0 %v633
      %664 = vmatprep.subr.mxu0 0.0
      %665 = vmatpush1.msra.mxu0 %v634
      %666 = vmatprep.subr.mxu0 0.0
      %667 = vmatpush1.msra.mxu0 %v635
      %668 = vmatprep.subr.mxu0 0.0
      %669 = vmatpush1.msra.mxu0 %v636
      %670 = vmatprep.subr.mxu0 0.0
      %671 = vmatpush1.msra.mxu0 %v637
      %672 = vmatprep.subr.mxu0 0.0
      %673 = vmatpush1.msra.mxu0 %v638
      %674 = vmatprep.subr.mxu0 0.0
      %675 = vmatpush1.msra.mxu0 %v639
      %676 = vmatprep.subr.mxu0 0.0
      %677 = vmatpush1.msra.mxu0 %v640
      %678 = vmatprep.subr.mxu0 0.0
      %679 = vmatpush1.msra.mxu0 %v641
      %680 = vmatprep.subr.mxu0 0.0
      %681 = vmatpush1.msra.mxu0 %v642
      %682 = vmatprep.subr.mxu0 0.0
      %683 = vmatpush1.msra.mxu0 0.0
      %684 = vmatprep.subr.mxu0 0.0
      %685 = vmatpush1.msra.mxu0 0.0
      %686 = vmatprep.subr.mxu0 0.0
      %687 = vmatpush1.msra.mxu0 0.0
      %688 = vmatprep.subr.mxu0 0.0
      %689 = vmatpush1.msra.mxu0 0.0
      %690 = vmatprep.subr.mxu0 0.0
      %691 = vmatpush1.msra.mxu0 0.0
      %692 = vmatprep.subr.mxu0 0.0
      %693 = vmatpush1.msra.mxu0 0.0
      %694 = vmatprep.subr.mxu0 0.0
      %695 = vmatpush1.msra.mxu0 0.0
      %696 = vmatprep.subr.mxu0 0.0
      %697 = vmatpush1.msra.mxu0 0.0
      %698 = vmatprep.subr.mxu0 0.0
      %699 = vmatpush1.msra.mxu0 0.0
      %700 = vmatprep.subr.mxu0 0.0
      %701 = vmatpush1.msra.mxu0 0.0
      %702 = vmatprep.subr.mxu0 0.0
      %703 = vmatpush1.msra.mxu0 0.0
      %704 = vmatprep.subr.mxu0 0.0
      %705 = vmatpush1.msra.mxu0 0.0
      %706 = vmatprep.subr.mxu0 0.0
      %707 = vmatpush1.msra.mxu0 0.0
      %708 = vmatprep.subr.mxu0 0.0
      %709 = vmatpush1.msra.mxu0 0.0
      %710 = vmatprep.subr.mxu0 0.0
      %711 = vmatpush1.msra.mxu0 0.0
      %712 = vmatprep.subr.mxu0 0.0
      %713 = vmatpush1.msra.mxu0 0.0
      %714 = vmatprep.mubr.f32.mxu0 0.0
      %715 = vmatmul.mubr.f32.gmra.mrb[0].mxu0 %v626
      %v716 = vpop.f32.mrb[0].mxu0
      %v717 = vadd.f32 %v648, %v716
      %v718 = vpop.f32.mrb[0].mxu0
      %719 = vdwg.mxu0
      %720 = vst [vmem:[#allocation7] sm:$0x3] %v717
    $region41: #{tpu_custom_call.1} parent=1 // pred_fallthru
      _
    // Predicated region
    $region42: #{tpu_custom_call.1} parent=1 // pred_check
      _
    $region43: #{tpu_custom_call.1} parent=1 // pred_check_branch
      %722 = sbr.rel (0) target = $region45
    $region44: #{tpu_custom_call.1} parent=1 // pred_region
      %s724 = ssub.s32 32, 32
      %725 = vsyncadd [#allocation5], %s724
      %s727 = sshll.u32 [#allocation6], 4
      %s728 = int_to_ptr.vmem [resolvable:$true] %s727
      %730 = dma.vmem_to_hbm [thread:$0]  %s728, 32, %s7, [#allocation5]
    $region45: #{tpu_custom_call.1} parent=1 // pred_fallthru
      _
    // Predicated region
    $region46: #{tpu_custom_call.1} parent=1 // pred_check
      _
    $region47: #{tpu_custom_call.1} parent=1 // pred_check_branch
      %732 = sbr.rel (0) target = $region49
    $region48: #{tpu_custom_call.1} parent=1 // pred_region
      %s734 = ssub.s32 32, 32
      %735 = vsyncadd [#allocation8], %s734
      %s737 = sshll.u32 [#allocation7], 4
      %s738 = int_to_ptr.vmem [resolvable:$true] %s737
      %740 = dma.vmem_to_hbm [thread:$0]  %s738, 32, %s8, [#allocation8]
    $region49: #{tpu_custom_call.1} parent=1 // pred_fallthru
      _
    // Predicated region
    $region50: #{tpu_custom_call.1} parent=1 // pred_check
      _
    $region51: #{tpu_custom_call.1} parent=1 // pred_check_branch
      %742 = sbr.rel (0) target = $region53
    $region52: #{tpu_custom_call.1} parent=1 // pred_region
      %s744 = ssub.s32 32, 32
      %745 = vsyncadd [#allocation8], %s744
      %s747 = sshll.u32 [#allocation9], 4
      %s748 = int_to_ptr.vmem [resolvable:$true] %s747
      %750 = dma.vmem_to_hbm [thread:$0]  %s748, 32, %s9, [#allocation8]
    $region53: #{tpu_custom_call.1} parent=1 // pred_fallthru
      _
    // Predicated region
    $region54: #{tpu_custom_call.1} parent=1 // pred_check
      _
    $region55: #{tpu_custom_call.1} parent=1 // pred_check_branch
      %752 = sbr.rel (0) target = $region57
    $region56: #{tpu_custom_call.1} parent=1 // pred_region
      %753 = dma.done [#allocation5], 32
    $region57: #{tpu_custom_call.1} parent=1 // pred_fallthru
      _
    // Predicated region
    $region58: #{tpu_custom_call.1} parent=1 // pred_check
      _
    $region59: #{tpu_custom_call.1} parent=1 // pred_check_branch
      %755 = sbr.rel (0) target = $region61
    $region60: #{tpu_custom_call.1} parent=1 // pred_region
      %756 = dma.done [#allocation8], 32
    $region61: #{tpu_custom_call.1} parent=1 // pred_fallthru
      _
    // Predicated region
    $region62: #{tpu_custom_call.1} parent=1 // pred_check
      _
    $region63: #{tpu_custom_call.1} parent=1 // pred_check_branch
      %758 = sbr.rel (0) target = $region65
    $region64: #{tpu_custom_call.1} parent=1 // pred_region
      %759 = dma.done [#allocation8], 32
    $region65: #{tpu_custom_call.1} parent=1 // pred_fallthru
      _
    %760 = vsyncpa [#allocation4], 1
    %761 = vsyncpa [#allocation5], 1
    %762 = vsyncpa [#allocation8], 1

// kernel: tpu_custom_call.1
$region0: #{tpu_custom_call.1}
  #allocation0 [shape = 'u32[]', space=smem, size = 0x4, offset = 0x4, fixed_abs, tag = 'smem constant byte address 0x4 - core index']
  #allocation1 [shape = 'u32[144,128]{1,0:T(1,128)}', space=vmem, size = 0x12000, scoped, tag = 'internal scratch']
  #allocation2 [shape = 'f32[2,32]{1,0:T(2,128)}', space=vmem, size = 0x400, scoped, tag = 'scratch operand']
  %s0 = inlined_call_operand.vmem [shape: f32[2,4,256], index: 0, kind: input, shape index: {}]
  %s1 = inlined_call_operand.vmem [shape: f32[32,4], index: 1, kind: input, shape index: {}]
  %s2 = inlined_call_operand.vmem [shape: f32[32,1], index: 2, kind: input, shape index: {}]
  %s3 = inlined_call_operand.vmem [shape: f32[32,256], index: 3, kind: input, shape index: {}]
  %s4 = inlined_call_operand.vmem [shape: f32[1,256], index: 4, kind: input, shape index: {}]
  %s5 = inlined_call_operand.hbm [shape: f32[128,128], index: 5, kind: input, shape index: {}]
  %s6 = inlined_call_operand.vmem [shape: f32[1,128], index: 6, kind: input, shape index: {}]
  %s7 = inlined_call_operand.hbm [shape: f32[2,128], index: 7, kind: output, shape index: {0}]
  %s8 = inlined_call_operand.hbm [shape: f32[2,128], index: 8, kind: output, shape index: {1}]
  %s9 = inlined_call_operand.hbm [shape: f32[2,32], index: 9, kind: output, shape index: {2}]
  %10 = xla_tuple %s7, %s8, %s9
  %s11 = sld [smem:[#allocation0]]
  $region66: #{tpu_custom_call.1} parent=0
    _
  %s13 = ssub.s32 1, %s11
  %s14 = scalar_select 0, %s13, %s11
  $region1: #{tpu_custom_call.1} parent=0
    #allocation3 [shape = 'u8[65536]{0}', space=vmem, size = 0x10000, scoped, tag = 'input window, operand 5, single buffered']
    #allocation4 [shape = 's32[1]{0}', space=sflag, size = 0x4, scoped, tag = 'scoped memory for tpu_custom_call.1']
    #allocation5 [shape = 's32[1]{0}', space=sflag, size = 0x4, scoped, tag = 'scoped memory for tpu_custom_call.1']
    #allocation6 [shape = 'u8[1024]{0}', space=vmem, size = 0x400, scoped, tag = 'output window, operand 0, single buffered']
    #allocation7 [shape = 'u8[1024]{0}', space=vmem, size = 0x400, scoped, tag = 'output window, operand 1, single buffered']
    #allocation8 [shape = 's32[1]{0}', space=sflag, size = 0x4, scoped, tag = 'scoped memory for tpu_custom_call.1']
    #allocation9 [shape = 'u8[1024]{0}', space=vmem, size = 0x400, scoped, tag = 'output window, operand 2, single buffered']
    %15 = vsyncpa [#allocation4], 0
    %16 = vsyncpa [#allocation5], 0
    %17 = vsyncpa [#allocation8], 0
    // Predicated region
    $region2: #{tpu_custom_call.1} parent=1 // pred_check
      _
    $region3: #{tpu_custom_call.1} parent=1 // pred_check_branch
      %19 = sbr.rel (0) target = $region5
    $region4: #{tpu_custom_call.1} parent=1 // pred_region
      _
    $region5: #{tpu_custom_call.1} parent=1 // pred_fallthru
      _
    // Predicated region
    $region6: #{tpu_custom_call.1} parent=1 // pred_check
      _
    $region7: #{tpu_custom_call.1} parent=1 // pred_check_branch
      %21 = sbr.rel (0) target = $region9
    $region8: #{tpu_custom_call.1} parent=1 // pred_region
      _
    $region9: #{tpu_custom_call.1} parent=1 // pred_fallthru
      _
    // Predicated region
    $region10: #{tpu_custom_call.1} parent=1 // pred_check
      _
    $region11: #{tpu_custom_call.1} parent=1 // pred_check_branch
      %23 = sbr.rel (0) target = $region13
    $region12: #{tpu_custom_call.1} parent=1 // pred_region
      _
    $region13: #{tpu_custom_call.1} parent=1 // pred_fallthru
      _
    // Predicated region
    $region14: #{tpu_custom_call.1} parent=1 // pred_check
      _
    $region15: #{tpu_custom_call.1} parent=1 // pred_check_branch
      %25 = sbr.rel (0) target = $region17
    $region16: #{tpu_custom_call.1} parent=1 // pred_region
      _
    $region17: #{tpu_custom_call.1} parent=1 // pred_fallthru
      _
    // Predicated region
    $region18: #{tpu_custom_call.1} parent=1 // pred_check
      _
    $region19: #{tpu_custom_call.1} parent=1 // pred_check_branch
      %27 = sbr.rel (0) target = $region21
    $region20: #{tpu_custom_call.1} parent=1 // pred_region
      _
    $region21: #{tpu_custom_call.1} parent=1 // pred_fallthru
      _
    // Predicated region
    $region22: #{tpu_custom_call.1} parent=1 // pred_check
      _
    $region23: #{tpu_custom_call.1} parent=1 // pred_check_branch
      %29 = sbr.rel (0) target = $region25
    $region24: #{tpu_custom_call.1} parent=1 // pred_region
      %s31 = ssub.s32 2048, 2048
      %32 = vsyncadd [#allocation4], %s31
      %s33 = sshll.u32 [#allocation3], 4
      %s34 = int_to_ptr.vmem [resolvable:$true] %s33
      %39 = dma.hbm_to_vmem [thread:$0]  %s5, 2048, %s34, [#allocation4], 128, 128, 8
    $region25: #{tpu_custom_call.1} parent=1 // pred_fallthru
      _
    // Predicated region
    $region26: #{tpu_custom_call.1} parent=1 // pred_check
      _
    $region27: #{tpu_custom_call.1} parent=1 // pred_check_branch
      %41 = sbr.rel (0) target = $region29
    $region28: #{tpu_custom_call.1} parent=1 // pred_region
      _
    $region29: #{tpu_custom_call.1} parent=1 // pred_fallthru
      _
    // Predicated region
    $region30: #{tpu_custom_call.1} parent=1 // pred_check
      _
    $region31: #{tpu_custom_call.1} parent=1 // pred_check_branch
      %43 = sbr.rel (0) target = $region33
    $region32: #{tpu_custom_call.1} parent=1 // pred_region
      %44 = dma.done [#allocation4], 2048
    $region33: #{tpu_custom_call.1} parent=1 // pred_fallthru
      _
    %v45 = vld [vmem:[%s0] sm:$0xff]
    %v46 = vld [vmem:[%s0 + $0x8] sm:$0xff]
    %v47 = vld [vmem:[%s1] sm:$0xff]
    %v48 = vld [vmem:[%s1 + $0x8] sm:$0xff]
    %v49 = vld [vmem:[%s1 + $0x10] sm:$0xff]
    %v50 = vld [vmem:[%s1 + $0x18] sm:$0xff]
    %v51 = vld [vmem:[%s2] sm:$0xff]
    %v52 = vld [vmem:[%s2 + $0x8] sm:$0xff]
    %v53 = vld [vmem:[%s2 + $0x10] sm:$0xff]
    %v54 = vld [vmem:[%s2 + $0x18] sm:$0xff]
    %56 = vset.pattern.permute.xlu0 0
    %57 = vperm.xlu0 %56, %v47
    %v58 = vpop.permute.xlu0 %57
    %61 = vset.pattern.permute.xlu0 0
    %62 = vperm.xlu0 %61, %v48
    %v63 = vpop.permute.xlu0 %62
    %66 = vset.pattern.permute.xlu0 0
    %67 = vperm.xlu0 %66, %v49
    %v68 = vpop.permute.xlu0 %67
    %71 = vset.pattern.permute.xlu0 0
    %72 = vperm.xlu0 %71, %v50
    %v73 = vpop.permute.xlu0 %72
    %v77 = vlaneseq
    %v78 = vshrl.u32 %v77, 7
    %v79 = vsub.s32 0, %v78
    %v80 = vrot.slane %v45, %v79
    %v81 = vlaneseq
    %v82 = vshrl.u32 %v81, 7
    %v83 = vsub.s32 4, %v82
    %v84 = vrot.slane %v45, %v83
    %v85 = vlaneseq
    %v86 = vshrl.u32 %v85, 7
    %v87 = vsub.s32 0, %v86
    %v88 = vrot.slane %v46, %v87
    %v89 = vlaneseq
    %v90 = vshrl.u32 %v89, 7
    %v91 = vsub.s32 4, %v90
    %v92 = vrot.slane %v46, %v91
    %v97 = vlaneseq
    %v98 = vshrl.u32 %v97, 7
    %v99 = vsub.s32 0, %v98
    %v100 = vrot.slane %v80, %v99
    %v101 = vlaneseq
    %v102 = vshrl.u32 %v101, 7
    %v103 = vsub.s32 0, %v102
    %v104 = vrot.slane %v84, %v103
    %v105 = vlaneseq
    %v106 = vshrl.u32 %v105, 7
    %v107 = vsub.s32 0, %v106
    %v108 = vrot.slane %v88, %v107
    %v109 = vlaneseq
    %v110 = vshrl.u32 %v109, 7
    %v111 = vsub.s32 0, %v110
    %v112 = vrot.slane %v92, %v111
    %v113 = vmul.f32 %v58, %v100
    %v114 = vmul.f32 %v58, %v104
    %v115 = vmul.f32 %v63, %v100
    %v116 = vmul.f32 %v63, %v104
    %v117 = vmul.f32 %v68, %v100
    %v118 = vmul.f32 %v68, %v104
    %v119 = vmul.f32 %v73, %v100
    %v120 = vmul.f32 %v73, %v104
    %v121 = vmul.f32 %v58, %v108
    %v122 = vmul.f32 %v58, %v112
    %v123 = vmul.f32 %v63, %v108
    %v124 = vmul.f32 %v63, %v112
    %v125 = vmul.f32 %v68, %v108
    %v126 = vmul.f32 %v68, %v112
    %v127 = vmul.f32 %v73, %v108
    %v128 = vmul.f32 %v73, %v112
    %130 = vset.pattern.permute.xlu0 0
    %131 = vperm.xlu0 %130, %v51
    %v132 = vpop.permute.xlu0 %131
    %135 = vset.pattern.permute.xlu0 0
    %136 = vperm.xlu0 %135, %v52
    %v137 = vpop.permute.xlu0 %136
    %140 = vset.pattern.permute.xlu0 0
    %141 = vperm.xlu0 %140, %v53
    %v142 = vpop.permute.xlu0 %141
    %145 = vset.pattern.permute.xlu0 0
    %146 = vperm.xlu0 %145, %v54
    %v147 = vpop.permute.xlu0 %146
    %v149 = vadd.f32 %v132, %v113
    %v150 = vadd.f32 %v132, %v114
    %v151 = vadd.f32 %v137, %v115
    %v152 = vadd.f32 %v137, %v116
    %v153 = vadd.f32 %v142, %v117
    %v154 = vadd.f32 %v142, %v118
    %v155 = vadd.f32 %v147, %v119
    %v156 = vadd.f32 %v147, %v120
    %v157 = vadd.f32 %v132, %v121
    %v158 = vadd.f32 %v132, %v122
    %v159 = vadd.f32 %v137, %v123
    %v160 = vadd.f32 %v137, %v124
    %v161 = vadd.f32 %v142, %v125
    %v162 = vadd.f32 %v142, %v126
    %v163 = vadd.f32 %v147, %v127
    %v164 = vadd.f32 %v147, %v128
    %165 = vset.pattern.permute.xlu0 1
    %166 = vperm.xlu0 %165, %v47
    %v167 = vpop.permute.xlu0 %166
    %169 = vset.pattern.permute.xlu0 1
    %170 = vperm.xlu0 %169, %v48
    %v171 = vpop.permute.xlu0 %170
    %173 = vset.pattern.permute.xlu0 1
    %174 = vperm.xlu0 %173, %v49
    %v175 = vpop.permute.xlu0 %174
    %177 = vset.pattern.permute.xlu0 1
    %178 = vperm.xlu0 %177, %v50
    %v179 = vpop.permute.xlu0 %178
    %v181 = vlaneseq
    %v182 = vshrl.u32 %v181, 7
    %v183 = vsub.s32 1, %v182
    %v184 = vrot.slane %v45, %v183
    %v185 = vlaneseq
    %v186 = vshrl.u32 %v185, 7
    %v187 = vsub.s32 5, %v186
    %v188 = vrot.slane %v45, %v187
    %v189 = vlaneseq
    %v190 = vshrl.u32 %v189, 7
    %v191 = vsub.s32 1, %v190
    %v192 = vrot.slane %v46, %v191
    %v193 = vlaneseq
    %v194 = vshrl.u32 %v193, 7
    %v195 = vsub.s32 5, %v194
    %v196 = vrot.slane %v46, %v195
    %v201 = vlaneseq
    %v202 = vshrl.u32 %v201, 7
    %v203 = vsub.s32 1, %v202
    %v204 = vrot.slane %v184, %v203
    %v205 = vlaneseq
    %v206 = vshrl.u32 %v205, 7
    %v207 = vsub.s32 1, %v206
    %v208 = vrot.slane %v188, %v207
    %v209 = vlaneseq
    %v210 = vshrl.u32 %v209, 7
    %v211 = vsub.s32 1, %v210
    %v212 = vrot.slane %v192, %v211
    %v213 = vlaneseq
    %v214 = vshrl.u32 %v213, 7
    %v215 = vsub.s32 1, %v214
    %v216 = vrot.slane %v196, %v215
    %v217 = vmul.f32 %v167, %v204
    %v218 = vmul.f32 %v167, %v208
    %v219 = vmul.f32 %v171, %v204
    %v220 = vmul.f32 %v171, %v208
    %v221 = vmul.f32 %v175, %v204
    %v222 = vmul.f32 %v175, %v208
    %v223 = vmul.f32 %v179, %v204
    %v224 = vmul.f32 %v179, %v208
    %v225 = vmul.f32 %v167, %v212
    %v226 = vmul.f32 %v167, %v216
    %v227 = vmul.f32 %v171, %v212
    %v228 = vmul.f32 %v171, %v216
    %v229 = vmul.f32 %v175, %v212
    %v230 = vmul.f32 %v175, %v216
    %v231 = vmul.f32 %v179, %v212
    %v232 = vmul.f32 %v179, %v216
    %v233 = vadd.f32 %v149, %v217
    %v234 = vadd.f32 %v150, %v218
    %v235 = vadd.f32 %v151, %v219
    %v236 = vadd.f32 %v152, %v220
    %v237 = vadd.f32 %v153, %v221
    %v238 = vadd.f32 %v154, %v222
    %v239 = vadd.f32 %v155, %v223
    %v240 = vadd.f32 %v156, %v224
    %v241 = vadd.f32 %v157, %v225
    %v242 = vadd.f32 %v158, %v226
    %v243 = vadd.f32 %v159, %v227
    %v244 = vadd.f32 %v160, %v228
    %v245 = vadd.f32 %v161, %v229
    %v246 = vadd.f32 %v162, %v230
    %v247 = vadd.f32 %v163, %v231
    %v248 = vadd.f32 %v164, %v232
    %249 = vset.pattern.permute.xlu0 2
    %250 = vperm.xlu0 %249, %v47
    %v251 = vpop.permute.xlu0 %250
    %253 = vset.pattern.permute.xlu0 2
    %254 = vperm.xlu0 %253, %v48
    %v255 = vpop.permute.xlu0 %254
    %257 = vset.pattern.permute.xlu0 2
    %258 = vperm.xlu0 %257, %v49
    %v259 = vpop.permute.xlu0 %258
    %261 = vset.pattern.permute.xlu0 2
    %262 = vperm.xlu0 %261, %v50
    %v263 = vpop.permute.xlu0 %262
    %v265 = vlaneseq
    %v266 = vshrl.u32 %v265, 7
    %v267 = vsub.s32 2, %v266
    %v268 = vrot.slane %v45, %v267
    %v269 = vlaneseq
    %v270 = vshrl.u32 %v269, 7
    %v271 = vsub.s32 6, %v270
    %v272 = vrot.slane %v45, %v271
    %v273 = vlaneseq
    %v274 = vshrl.u32 %v273, 7
    %v275 = vsub.s32 2, %v274
    %v276 = vrot.slane %v46, %v275
    %v277 = vlaneseq
    %v278 = vshrl.u32 %v277, 7
    %v279 = vsub.s32 6, %v278
    %v280 = vrot.slane %v46, %v279
    %v285 = vlaneseq
    %v286 = vshrl.u32 %v285, 7
    %v287 = vsub.s32 2, %v286
    %v288 = vrot.slane %v268, %v287
    %v289 = vlaneseq
    %v290 = vshrl.u32 %v289, 7
    %v291 = vsub.s32 2, %v290
    %v292 = vrot.slane %v272, %v291
    %v293 = vlaneseq
    %v294 = vshrl.u32 %v293, 7
    %v295 = vsub.s32 2, %v294
    %v296 = vrot.slane %v276, %v295
    %v297 = vlaneseq
    %v298 = vshrl.u32 %v297, 7
    %v299 = vsub.s32 2, %v298
    %v300 = vrot.slane %v280, %v299
    %v301 = vmul.f32 %v251, %v288
    %v302 = vmul.f32 %v251, %v292
    %v303 = vmul.f32 %v255, %v288
    %v304 = vmul.f32 %v255, %v292
    %v305 = vmul.f32 %v259, %v288
    %v306 = vmul.f32 %v259, %v292
    %v307 = vmul.f32 %v263, %v288
    %v308 = vmul.f32 %v263, %v292
    %v309 = vmul.f32 %v251, %v296
    %v310 = vmul.f32 %v251, %v300
    %v311 = vmul.f32 %v255, %v296
    %v312 = vmul.f32 %v255, %v300
    %v313 = vmul.f32 %v259, %v296
    %v314 = vmul.f32 %v259, %v300
    %v315 = vmul.f32 %v263, %v296
    %v316 = vmul.f32 %v263, %v300
    %v317 = vadd.f32 %v233, %v301
    %v318 = vadd.f32 %v234, %v302
    %v319 = vadd.f32 %v235, %v303
    %v320 = vadd.f32 %v236, %v304
    %v321 = vadd.f32 %v237, %v305
    %v322 = vadd.f32 %v238, %v306
    %v323 = vadd.f32 %v239, %v307
    %v324 = vadd.f32 %v240, %v308
    %v325 = vadd.f32 %v241, %v309
    %v326 = vadd.f32 %v242, %v310
    %v327 = vadd.f32 %v243, %v311
    %v328 = vadd.f32 %v244, %v312
    %v329 = vadd.f32 %v245, %v313
    %v330 = vadd.f32 %v246, %v314
    %v331 = vadd.f32 %v247, %v315
    %v332 = vadd.f32 %v248, %v316
    %333 = vset.pattern.permute.xlu0 3
    %334 = vperm.xlu0 %333, %v47
    %v335 = vpop.permute.xlu0 %334
    %337 = vset.pattern.permute.xlu0 3
    %338 = vperm.xlu0 %337, %v48
    %v339 = vpop.permute.xlu0 %338
    %341 = vset.pattern.permute.xlu0 3
    %342 = vperm.xlu0 %341, %v49
    %v343 = vpop.permute.xlu0 %342
    %345 = vset.pattern.permute.xlu0 3
    %346 = vperm.xlu0 %345, %v50
    %v347 = vpop.permute.xlu0 %346
    %v349 = vlaneseq
    %v350 = vshrl.u32 %v349, 7
    %v351 = vsub.s32 3, %v350
    %v352 = vrot.slane %v45, %v351
    %v353 = vlaneseq
    %v354 = vshrl.u32 %v353, 7
    %v355 = vsub.s32 7, %v354
    %v356 = vrot.slane %v45, %v355
    %v357 = vlaneseq
    %v358 = vshrl.u32 %v357, 7
    %v359 = vsub.s32 3, %v358
    %v360 = vrot.slane %v46, %v359
    %v361 = vlaneseq
    %v362 = vshrl.u32 %v361, 7
    %v363 = vsub.s32 7, %v362
    %v364 = vrot.slane %v46, %v363
    %v369 = vlaneseq
    %v370 = vshrl.u32 %v369, 7
    %v371 = vsub.s32 3, %v370
    %v372 = vrot.slane %v352, %v371
    %v373 = vlaneseq
    %v374 = vshrl.u32 %v373, 7
    %v375 = vsub.s32 3, %v374
    %v376 = vrot.slane %v356, %v375
    %v377 = vlaneseq
    %v378 = vshrl.u32 %v377, 7
    %v379 = vsub.s32 3, %v378
    %v380 = vrot.slane %v360, %v379
    %v381 = vlaneseq
    %v382 = vshrl.u32 %v381, 7
    %v383 = vsub.s32 3, %v382
    %v384 = vrot.slane %v364, %v383
    %v385 = vmul.f32 %v335, %v372
    %v386 = vmul.f32 %v335, %v376
    %v387 = vmul.f32 %v339, %v372
    %v388 = vmul.f32 %v339, %v376
    %v389 = vmul.f32 %v343, %v372
    %v390 = vmul.f32 %v343, %v376
    %v391 = vmul.f32 %v347, %v372
    %v392 = vmul.f32 %v347, %v376
    %v393 = vmul.f32 %v335, %v380
    %v394 = vmul.f32 %v335, %v384
    %v395 = vmul.f32 %v339, %v380
    %v396 = vmul.f32 %v339, %v384
    %v397 = vmul.f32 %v343, %v380
    %v398 = vmul.f32 %v343, %v384
    %v399 = vmul.f32 %v347, %v380
    %v400 = vmul.f32 %v347, %v384
    %v401 = vadd.f32 %v317, %v385
    %v402 = vadd.f32 %v318, %v386
    %v403 = vadd.f32 %v319, %v387
    %v404 = vadd.f32 %v320, %v388
    %v405 = vadd.f32 %v321, %v389
    %v406 = vadd.f32 %v322, %v390
    %v407 = vadd.f32 %v323, %v391
    %v408 = vadd.f32 %v324, %v392
    %v409 = vadd.f32 %v325, %v393
    %v410 = vadd.f32 %v326, %v394
    %v411 = vadd.f32 %v327, %v395
    %v412 = vadd.f32 %v328, %v396
    %v413 = vadd.f32 %v329, %v397
    %v414 = vadd.f32 %v330, %v398
    %v415 = vadd.f32 %v331, %v399
    %v416 = vadd.f32 %v332, %v400
    %v417 = vmax.f32 %v401, 0.0
    %v418 = vmax.f32 %v402, 0.0
    %v419 = vmax.f32 %v403, 0.0
    %v420 = vmax.f32 %v404, 0.0
    %v421 = vmax.f32 %v405, 0.0
    %v422 = vmax.f32 %v406, 0.0
    %v423 = vmax.f32 %v407, 0.0
    %v424 = vmax.f32 %v408, 0.0
    %v425 = vmax.f32 %v409, 0.0
    %v426 = vmax.f32 %v410, 0.0
    %v427 = vmax.f32 %v411, 0.0
    %v428 = vmax.f32 %v412, 0.0
    %v429 = vmax.f32 %v413, 0.0
    %v430 = vmax.f32 %v414, 0.0
    %v431 = vmax.f32 %v415, 0.0
    %v432 = vmax.f32 %v416, 0.0
    %v433 = vadd.f32 %v417, %v418
    %434 = vadd.xlane.f32.xlu0 %v433
    %v435 = vpop.xlane.xlu0 %434
    %v436 = vadd.f32 %v419, %v420
    %437 = vadd.xlane.f32.xlu0 %v436
    %v438 = vpop.xlane.xlu0 %437
    %v439 = vadd.f32 %v421, %v422
    %440 = vadd.xlane.f32.xlu0 %v439
    %v441 = vpop.xlane.xlu0 %440
    %v442 = vadd.f32 %v423, %v424
    %443 = vadd.xlane.f32.xlu0 %v442
    %v444 = vpop.xlane.xlu0 %443
    %v445 = vadd.f32 %v425, %v426
    %446 = vadd.xlane.f32.xlu0 %v445
    %v447 = vpop.xlane.xlu0 %446
    %v448 = vadd.f32 %v427, %v428
    %449 = vadd.xlane.f32.xlu0 %v448
    %v450 = vpop.xlane.xlu0 %449
    %v451 = vadd.f32 %v429, %v430
    %452 = vadd.xlane.f32.xlu0 %v451
    %v453 = vpop.xlane.xlu0 %452
    %v454 = vadd.f32 %v431, %v432
    %455 = vadd.xlane.f32.xlu0 %v454
    %v456 = vpop.xlane.xlu0 %455
    %p457 = scmp.eq.s32.totalorder 0, 0
    // Predicated region
    $region34: #{tpu_custom_call.1} parent=1 // pred_check
      %p458 = pneg %p457
    $region35: #{tpu_custom_call.1} parent=1 // pred_check_branch
      %460 = sbr.rel (%p458) target = $region37
    $region36: #{tpu_custom_call.1} parent=1 // pred_region
      %vm461 = vcmask 254976
      %462 = vst.msk [vmem:[#allocation2] sm:$0x3] %vm461, 0.0
    $region37: #{tpu_custom_call.1} parent=1 // pred_fallthru
      _
    %v463 = vld [vmem:[#allocation2] sm:$0x3]
    %v472 = vlaneseq
    %v473 = vand.u32 %v472, 127
    %v474 = vlaneseq
    %v475 = vshrl.u32 %v474, 7
    %v476 = vsub.s32 %v473, %v475
    %v477 = vrot.slane %v435, %v476
    %v478 = vadd.s32 %v473, 4294967288
    %v479 = vlaneseq
    %v480 = vshrl.u32 %v479, 7
    %v481 = vsub.s32 %v478, %v480
    %v482 = vrot.slane %v438, %v481
    %vm483 = vcmask 130112
    %v484 = vsel %vm483, %v482, %v477
    %v485 = vadd.s32 %v473, 4294967280
    %v486 = vlaneseq
    %v487 = vshrl.u32 %v486, 7
    %v488 = vsub.s32 %v485, %v487
    %v489 = vrot.slane %v441, %v488
    %vm490 = vcmask 195712
    %v491 = vsel %vm490, %v489, %v484
    %v492 = vadd.s32 %v473, 4294967272
    %v493 = vlaneseq
    %v494 = vshrl.u32 %v493, 7
    %v495 = vsub.s32 %v492, %v494
    %v496 = vrot.slane %v444, %v495
    %vm497 = vcmask 261312
    %v498 = vsel %vm497, %v496, %v491
    %v499 = vlaneseq
    %v500 = vshrl.u32 %v499, 7
    %v501 = vsub.s32 %v473, %v500
    %v502 = vrot.slane %v447, %v501
    %v503 = vlaneseq
    %v504 = vshrl.u32 %v503, 7
    %v505 = vsub.s32 %v478, %v504
    %v506 = vrot.slane %v450, %v505
    %v507 = vsel %vm483, %v506, %v502
    %v508 = vlaneseq
    %v509 = vshrl.u32 %v508, 7
    %v510 = vsub.s32 %v485, %v509
    %v511 = vrot.slane %v453, %v510
    %v512 = vsel %vm490, %v511, %v507
    %v513 = vlaneseq
    %v514 = vshrl.u32 %v513, 7
    %v515 = vsub.s32 %v492, %v514
    %v516 = vrot.slane %v456, %v515
    %v517 = vsel %vm497, %v516, %v512
    %vm518 = vcmask 1041409
    %v519 = vsel %vm518, %v517, %v498
    %v521 = vadd.f32 %v463, %v519
    %vm522 = vcmask 254976
    %523 = vst.msk [vmem:[#allocation2] sm:$0x3] %vm522, %v521
    // Predicated region
    $region38: #{tpu_custom_call.1} parent=1 // pred_check
      %p524 = pneg %p457
    $region39: #{tpu_custom_call.1} parent=1 // pred_check_branch
      %526 = sbr.rel (%p524) target = $region41
    $region40: #{tpu_custom_call.1} parent=1 // pred_region
      %v527 = vld [vmem:[#allocation2] sm:$0x3]
      %v528 = vmul.f32 %v527, 0.00390625
      %529 = vst.msk [vmem:[#allocation9] sm:$0x3] %vm522, %v528
      %v530 = vld [vmem:[%s3] sm:$0xff]
      %v531 = vld [vmem:[%s3 + $0x8] sm:$0xff]
      %v532 = vld [vmem:[%s3 + $0x10] sm:$0xff]
      %v533 = vld [vmem:[%s3 + $0x18] sm:$0xff]
      %v534 = vld [vmem:[%s3 + $0x20] sm:$0xff]
      %v535 = vld [vmem:[%s3 + $0x28] sm:$0xff]
      %v536 = vld [vmem:[%s3 + $0x30] sm:$0xff]
      %v537 = vld [vmem:[%s3 + $0x38] sm:$0xff]
      %v538 = vld [vmem:[%s4] sm:$0x3]
      %v540 = vlaneseq
      %v541 = vshrl.u32 %v540, 7
      %v542 = vsub.s32 0, %v541
      %v543 = vrot.slane %v538, %v542
      %v544 = vlaneseq
      %v545 = vshrl.u32 %v544, 7
      %v546 = vsub.s32 1, %v545
      %v547 = vrot.slane %v538, %v546
      %vm550 = vcmask 261120
      %v552 = vsel %vm550, %v528, 0
      %554 = vmatprep.subr.mxu0 %v531
      %555 = vmatpush1.msra.mxu0 %v530
      %556 = vmatprep.subr.mxu0 %v533
      %557 = vmatpush1.msra.mxu0 %v532
      %558 = vmatprep.subr.mxu0 %v535
      %559 = vmatpush1.msra.mxu0 %v534
      %560 = vmatprep.subr.mxu0 %v537
      %561 = vmatpush1.msra.mxu0 %v536
      %562 = vmatprep.subr.mxu0 0.0
      %563 = vmatpush1.msra.mxu0 0.0
      %564 = vmatprep.subr.mxu0 0.0
      %565 = vmatpush1.msra.mxu0 0.0
      %566 = vmatprep.subr.mxu0 0.0
      %567 = vmatpush1.msra.mxu0 0.0
      %568 = vmatprep.subr.mxu0 0.0
      %569 = vmatpush1.msra.mxu0 0.0
      %570 = vmatprep.subr.mxu0 0.0
      %571 = vmatpush1.msra.mxu0 0.0
      %572 = vmatprep.subr.mxu0 0.0
      %573 = vmatpush1.msra.mxu0 0.0
      %574 = vmatprep.subr.mxu0 0.0
      %575 = vmatpush1.msra.mxu0 0.0
      %576 = vmatprep.subr.mxu0 0.0
      %577 = vmatpush1.msra.mxu0 0.0
      %578 = vmatprep.subr.mxu0 0.0
      %579 = vmatpush1.msra.mxu0 0.0
      %580 = vmatprep.subr.mxu0 0.0
      %581 = vmatpush1.msra.mxu0 0.0
      %582 = vmatprep.subr.mxu0 0.0
      %583 = vmatpush1.msra.mxu0 0.0
      %584 = vmatprep.subr.mxu0 0.0
      %585 = vmatpush1.msra.mxu0 0.0
      %586 = vmatprep.subr.mxu0 0.0
      %587 = vmatpush1.msra.mxu0 0.0
      %588 = vmatprep.subr.mxu0 0.0
      %589 = vmatpush1.msra.mxu0 0.0
      %590 = vmatprep.subr.mxu0 0.0
      %591 = vmatpush1.msra.mxu0 0.0
      %592 = vmatprep.subr.mxu0 0.0
      %593 = vmatpush1.msra.mxu0 0.0
      %594 = vmatprep.subr.mxu0 0.0
      %595 = vmatpush1.msra.mxu0 0.0
      %596 = vmatprep.subr.mxu0 0.0
      %597 = vmatpush1.msra.mxu0 0.0
      %598 = vmatprep.subr.mxu0 0.0
      %599 = vmatpush1.msra.mxu0 0.0
      %600 = vmatprep.subr.mxu0 0.0
      %601 = vmatpush1.msra.mxu0 0.0
      %602 = vmatprep.subr.mxu0 0.0
      %603 = vmatpush1.msra.mxu0 0.0
      %604 = vmatprep.subr.mxu0 0.0
      %605 = vmatpush1.msra.mxu0 0.0
      %606 = vmatprep.subr.mxu0 0.0
      %607 = vmatpush1.msra.mxu0 0.0
      %608 = vmatprep.subr.mxu0 0.0
      %609 = vmatpush1.msra.mxu0 0.0
      %610 = vmatprep.subr.mxu0 0.0
      %611 = vmatpush1.msra.mxu0 0.0
      %612 = vmatprep.subr.mxu0 0.0
      %613 = vmatpush1.msra.mxu0 0.0
      %614 = vmatprep.subr.mxu0 0.0
      %615 = vmatpush1.msra.mxu0 0.0
      %616 = vmatprep.subr.mxu0 0.0
      %617 = vmatpush1.msra.mxu0 0.0
      %618 = vmatprep.mubr.f32.mxu0 0.0
      %619 = vmatmul.mubr.f32.gmra.mrb[0].mxu0 %v552
      %v620 = vpop.f32.mrb[0].mxu0
      %v621 = vadd.f32 %v543, %v620
      %v622 = vpop.f32.mrb[0].mxu0
      %v623 = vadd.f32 %v547, %v622
      %624 = vdwg.mxu0
      %625 = vst [vmem:[#allocation6] sm:$0x3] %v621
      %v626 = vmax.f32 %v623, 0.0
      %v627 = vld [vmem:[#allocation3] sm:$0xff]
      %v628 = vld [vmem:[#allocation3 + $0x8] sm:$0xff]
      %v629 = vld [vmem:[#allocation3 + $0x10] sm:$0xff]
      %v630 = vld [vmem:[#allocation3 + $0x18] sm:$0xff]
      %v631 = vld [vmem:[#allocation3 + $0x20] sm:$0xff]
      %v632 = vld [vmem:[#allocation3 + $0x28] sm:$0xff]
      %v633 = vld [vmem:[#allocation3 + $0x30] sm:$0xff]
      %v634 = vld [vmem:[#allocation3 + $0x38] sm:$0xff]
      %v635 = vld [vmem:[#allocation3 + $0x40] sm:$0xff]
      %v636 = vld [vmem:[#allocation3 + $0x48] sm:$0xff]
      %v637 = vld [vmem:[#allocation3 + $0x50] sm:$0xff]
      %v638 = vld [vmem:[#allocation3 + $0x58] sm:$0xff]
      %v639 = vld [vmem:[#allocation3 + $0x60] sm:$0xff]
      %v640 = vld [vmem:[#allocation3 + $0x68] sm:$0xff]
      %v641 = vld [vmem:[#allocation3 + $0x70] sm:$0xff]
      %v642 = vld [vmem:[#allocation3 + $0x78] sm:$0xff]
      %v643 = vld [vmem:[%s6] sm:$0x1]
      %v645 = vlaneseq
      %v646 = vshrl.u32 %v645, 7
      %v647 = vsub.s32 0, %v646
      %v648 = vrot.slane %v643, %v647
      %650 = vmatprep.subr.mxu0 0.0
      %651 = vmatpush1.msra.mxu0 %v627
      %652 = vmatprep.subr.mxu0 0.0
      %653 = vmatpush1.msra.mxu0 %v628
      %654 = vmatprep.subr.mxu0 0.0
      %655 = vmatpush1.msra.mxu0 %v629
      %656 = vmatprep.subr.mxu0 0.0
      %657 = vmatpush1.msra.mxu0 %v630
      %658 = vmatprep.subr.mxu0 0.0
      %659 = vmatpush1.msra.mxu0 %v631
      %660 = vmatprep.subr.mxu0 0.0
      %661 = vmatpush1.msra.mxu0 %v632
      %662 = vmatprep.subr.mxu0 0.0
      %663 = vmatpush1.msra.mxu0 %v633
      %664 = vmatprep.subr.mxu0 0.0
      %665 = vmatpush1.msra.mxu0 %v634
      %666 = vmatprep.subr.mxu0 0.0
      %667 = vmatpush1.msra.mxu0 %v635
      %668 = vmatprep.subr.mxu0 0.0
      %669 = vmatpush1.msra.mxu0 %v636
      %670 = vmatprep.subr.mxu0 0.0
      %671 = vmatpush1.msra.mxu0 %v637
      %672 = vmatprep.subr.mxu0 0.0
      %673 = vmatpush1.msra.mxu0 %v638
      %674 = vmatprep.subr.mxu0 0.0
      %675 = vmatpush1.msra.mxu0 %v639
      %676 = vmatprep.subr.mxu0 0.0
      %677 = vmatpush1.msra.mxu0 %v640
      %678 = vmatprep.subr.mxu0 0.0
      %679 = vmatpush1.msra.mxu0 %v641
      %680 = vmatprep.subr.mxu0 0.0
      %681 = vmatpush1.msra.mxu0 %v642
      %682 = vmatprep.subr.mxu0 0.0
      %683 = vmatpush1.msra.mxu0 0.0
      %684 = vmatprep.subr.mxu0 0.0
      %685 = vmatpush1.msra.mxu0 0.0
      %686 = vmatprep.subr.mxu0 0.0
      %687 = vmatpush1.msra.mxu0 0.0
      %688 = vmatprep.subr.mxu0 0.0
      %689 = vmatpush1.msra.mxu0 0.0
      %690 = vmatprep.subr.mxu0 0.0
      %691 = vmatpush1.msra.mxu0 0.0
      %692 = vmatprep.subr.mxu0 0.0
      %693 = vmatpush1.msra.mxu0 0.0
      %694 = vmatprep.subr.mxu0 0.0
      %695 = vmatpush1.msra.mxu0 0.0
      %696 = vmatprep.subr.mxu0 0.0
      %697 = vmatpush1.msra.mxu0 0.0
      %698 = vmatprep.subr.mxu0 0.0
      %699 = vmatpush1.msra.mxu0 0.0
      %700 = vmatprep.subr.mxu0 0.0
      %701 = vmatpush1.msra.mxu0 0.0
      %702 = vmatprep.subr.mxu0 0.0
      %703 = vmatpush1.msra.mxu0 0.0
      %704 = vmatprep.subr.mxu0 0.0
      %705 = vmatpush1.msra.mxu0 0.0
      %706 = vmatprep.subr.mxu0 0.0
      %707 = vmatpush1.msra.mxu0 0.0
      %708 = vmatprep.subr.mxu0 0.0
      %709 = vmatpush1.msra.mxu0 0.0
      %710 = vmatprep.subr.mxu0 0.0
      %711 = vmatpush1.msra.mxu0 0.0
      %712 = vmatprep.subr.mxu0 0.0
      %713 = vmatpush1.msra.mxu0 0.0
      %714 = vmatprep.mubr.f32.mxu0 0.0
      %715 = vmatmul.mubr.f32.gmra.mrb[0].mxu0 %v626
      %v716 = vpop.f32.mrb[0].mxu0
      %v717 = vadd.f32 %v648, %v716
      %v718 = vpop.f32.mrb[0].mxu0
      %719 = vdwg.mxu0
      %720 = vst [vmem:[#allocation7] sm:$0x3] %v717
    $region41: #{tpu_custom_call.1} parent=1 // pred_fallthru
      _
    // Predicated region
    $region42: #{tpu_custom_call.1} parent=1 // pred_check
      _
    $region43: #{tpu_custom_call.1} parent=1 // pred_check_branch
      %722 = sbr.rel (0) target = $region45
    $region44: #{tpu_custom_call.1} parent=1 // pred_region
      %s724 = ssub.s32 32, 32
      %725 = vsyncadd [#allocation5], %s724
      %s727 = sshll.u32 [#allocation6], 4
      %s728 = int_to_ptr.vmem [resolvable:$true] %s727
      %730 = dma.vmem_to_hbm [thread:$0]  %s728, 32, %s7, [#allocation5]
    $region45: #{tpu_custom_call.1} parent=1 // pred_fallthru
      _
    // Predicated region
    $region46: #{tpu_custom_call.1} parent=1 // pred_check
      _
    $region47: #{tpu_custom_call.1} parent=1 // pred_check_branch
      %732 = sbr.rel (0) target = $region49
    $region48: #{tpu_custom_call.1} parent=1 // pred_region
      %s734 = ssub.s32 32, 32
      %735 = vsyncadd [#allocation8], %s734
      %s737 = sshll.u32 [#allocation7], 4
      %s738 = int_to_ptr.vmem [resolvable:$true] %s737
      %740 = dma.vmem_to_hbm [thread:$0]  %s738, 32, %s8, [#allocation8]
    $region49: #{tpu_custom_call.1} parent=1 // pred_fallthru
      _
    // Predicated region
    $region50: #{tpu_custom_call.1} parent=1 // pred_check
      _
    $region51: #{tpu_custom_call.1} parent=1 // pred_check_branch
      %742 = sbr.rel (0) target = $region53
    $region52: #{tpu_custom_call.1} parent=1 // pred_region
      %s744 = ssub.s32 32, 32
      %745 = vsyncadd [#allocation8], %s744
      %s747 = sshll.u32 [#allocation9], 4
      %s748 = int_to_ptr.vmem [resolvable:$true] %s747
      %750 = dma.vmem_to_hbm [thread:$0]  %s748, 32, %s9, [#allocation8]
    $region53: #{tpu_custom_call.1} parent=1 // pred_fallthru
      _
    // Predicated region
    $region54: #{tpu_custom_call.1} parent=1 // pred_check
      _
    $region55: #{tpu_custom_call.1} parent=1 // pred_check_branch
      %752 = sbr.rel (0) target = $region57
    $region56: #{tpu_custom_call.1} parent=1 // pred_region
      %753 = dma.done [#allocation5], 32
    $region57: #{tpu_custom_call.1} parent=1 // pred_fallthru
      _
    // Predicated region
    $region58: #{tpu_custom_call.1} parent=1 // pred_check
      _
    $region59: #{tpu_custom_call.1} parent=1 // pred_check_branch
      %755 = sbr.rel (0) target = $region61
    $region60: #{tpu_custom_call.1} parent=1 // pred_region
      %756 = dma.done [#allocation8], 32
    $region61: #{tpu_custom_call.1} parent=1 // pred_fallthru
      _
    // Predicated region
    $region62: #{tpu_custom_call.1} parent=1 // pred_check
      _
    $region63: #{tpu_custom_call.1} parent=1 // pred_check_branch
      %758 = sbr.rel (0) target = $region65
    $region64: #{tpu_custom_call.1} parent=1 // pred_region
      %759 = dma.done [#allocation8], 32
    $region65: #{tpu_custom_call.1} parent=1 // pred_fallthru
      _
    %760 = vsyncpa [#allocation4], 1
    %761 = vsyncpa [#allocation5], 1
    %762 = vsyncpa [#allocation8], 1

</llo_original>
